<compile_context>
chip_gen: v5e
topology: v5e:2x2
jax: 0.10.0
libtpu: 0.0.40
codegen_flags: <defaults>
</compile_context>

<pallas_src>
import jax
import jax.numpy as jnp
from jax.experimental import pallas as pl
from jax.experimental.pallas import tpu as pltpu

_HALO_W = 8  # width of the zero W-halo in the conv scratch (sublane-aligned interior)


def _wfu_kernel(xbm_ref, xbt_ref, xbb_ref, xs_ref,
                rbw1_ref, rbb1_ref, rbw2_ref, rbb2_ref,
                ctw1s_ref, ctw1a_ref, ctb1_ref, ctw2_ref, ctb2_ref,
                out_ref, pad_ref):
    r = pl.program_id(1)
    n_rt = pl.num_programs(1)

    Bb, Rt, _, W2, twoC = xbm_ref.shape
    C = twoC // 2
    S = xs_ref.shape[-1]
    Wpad = pad_ref.shape[2]
    HW = _HALO_W
    pdt = pad_ref.dtype

    # ---- HaarWavelet forward on a (Bb, rows, 2, W2, 2C) chunk ---------------
    def haar(xb5):
        xb5 = xb5.astype(jnp.float32)
        even = xb5[:, :, 0]                      # pixel rows 2i   -> [p00 | p01]
        odd = xb5[:, :, 1]                       # pixel rows 2i+1 -> [p10 | p11]
        p00 = even[..., :C]
        p01 = even[..., C:]
        p10 = odd[..., :C]
        p11 = odd[..., C:]
        a = (p00 + p01 + p10 + p11) * 0.25
        return a, p00 - a                        # a, s (== h + v + d)

    # ---- zero the W halo columns every step (megacore/per-core-scratch safe) -
    pad_ref[:, :, 0:HW, :] = jnp.zeros((Bb, Rt + 4, HW, C), pdt)
    pad_ref[:, :, HW + W2:Wpad, :] = jnp.zeros((Bb, Rt + 4, Wpad - HW - W2, C), pdt)

    # ---- phase split + Haar; fill the 2-row s halo from neighbouring tiles ---
    a_mid, s_mid = haar(xbm_ref[...])
    _, s_top = haar(xbt_ref[...])
    _, s_bot = haar(xbb_ref[...])
    s_top = jnp.where(r == 0, 0.0, s_top)            # global top boundary -> zeros
    s_bot = jnp.where(r == n_rt - 1, 0.0, s_bot)     # global bottom boundary -> zeros

    pad_ref[:, 0:2, HW:HW + W2, :] = s_top.astype(pdt)
    pad_ref[:, 2:Rt + 2, HW:HW + W2, :] = s_mid.astype(pdt)
    pad_ref[:, Rt + 2:Rt + 4, HW:HW + W2, :] = s_bot.astype(pdt)

    # ---- 3x3 conv as 9 accumulating MXU dots (no 9x im2col temporary) --------
    def conv3x3(rows_out, w_ref, b_ref, c_out):
        m = Bb * rows_out * W2
        pad = pad_ref[...]                           # one bf16 load of the padded tile
        acc = jnp.zeros((m, c_out), jnp.float32)
        for dy in range(3):
            for dx in range(3):
                win = pad[:, dy:dy + rows_out, HW - 1 + dx:HW - 1 + dx + W2, :]
                acc = acc + jnp.dot(win.reshape(m, C), w_ref[dy * 3 + dx],
                                    preferred_element_type=jnp.float32)
        acc = acc + b_ref[...].astype(jnp.float32)
        return acc.reshape(Bb, rows_out, W2, c_out)

    # RB: conv3x3 -> ReLU -> conv3x3 (conv1 on a 1-row halo so conv2 is exact)
    r1 = jnp.maximum(conv3x3(Rt + 2, rbw1_ref, rbb1_ref, C), 0.0)
    pad_ref[:, 0:Rt + 2, HW:HW + W2, :] = r1.astype(pdt)

    # at the global boundary conv2 must see zero row-padding, not conv1(garbage)
    @pl.when(r == 0)
    def _():
        pad_ref[:, 0:1, HW:HW + W2, :] = jnp.zeros((Bb, 1, W2, C), pdt)

    @pl.when(r == n_rt - 1)
    def _():
        pad_ref[:, Rt + 1:Rt + 2, HW:HW + W2, :] = jnp.zeros((Bb, 1, W2, C), pdt)

    hvd = conv3x3(Rt, rbw2_ref, rbb2_ref, C)

    # ---- channel_transformation: split 1x1 convs (no xs||a concat) -----------
    m2 = Bb * Rt * W2
    xs2 = xs_ref[...].reshape(m2, S).astype(jnp.bfloat16)
    a2 = a_mid.reshape(m2, C).astype(jnp.bfloat16)
    z1 = (jnp.dot(xs2, ctw1s_ref[...], preferred_element_type=jnp.float32)
          + jnp.dot(a2, ctw1a_ref[...], preferred_element_type=jnp.float32)
          + ctb1_ref[...].astype(jnp.float32))
    z1 = jnp.maximum(z1, 0.0).astype(jnp.bfloat16)
    z2 = (jnp.dot(z1, ctw2_ref[...], preferred_element_type=jnp.float32)
          + ctb2_ref[...].astype(jnp.float32))
    a_ = z2.reshape(Bb, Rt, W2, 3 * C)

    # ---- InverseHaarWavelet + pixel re-interleave: two direct stores ---------
    c0 = hvd
    c1 = a_[..., 0:C]
    c2 = a_[..., C:2 * C]
    c3 = a_[..., 2 * C:3 * C]
    u = c0 + c2
    w = c1 + c3
    v = c0 - c2
    z = c1 - c3
    out_ref[:, :, 0] = jnp.concatenate([u + w, u - w], axis=-1).astype(out_ref.dtype)
    out_ref[:, :, 1] = jnp.concatenate([v + z, v - z], axis=-1).astype(out_ref.dtype)


def _vmem_budget_and_limit(budget=None, limit=None):
    """Pick a tiling byte budget and vmem_limit_bytes from the chip's VMEM size."""
    try:
        cap = int(getattr(pltpu.get_tpu_info(), "vmem_capacity_bytes", 128 * 2**20))
    except Exception:
        cap = 128 * 2**20
    if cap <= 64 * 2**20:                       # v7x-class (64 MiB physical)
        d_budget, d_limit = 32 * 2**20, 48 * 2**20
    else:                                       # v5e / v6e (128 MiB physical)
        d_budget, d_limit = 64 * 2**20, 96 * 2**20
    return (budget or d_budget), (limit or d_limit)


def _pick_tiling(B, H2, W2, C, S, *, in_bytes, w_bytes, budget):
    """Budget-driven (Bb, Rt): prefer >=4 grid steps, then the largest matmul M."""
    def est(Bb, Rt):
        xb_blk = Bb * Rt * 2 * W2 * 2 * C * in_bytes
        halo_blk = 2 * (Bb * 2 * 2 * W2 * 2 * C * in_bytes)
        xs_blk = Bb * Rt * W2 * S * in_bytes
        out_blk = Bb * Rt * 2 * W2 * 2 * C * 4
        pad_scr = Bb * (Rt + 4) * (W2 + 2 * _HALO_W) * C * 2            # bf16 scratch
        tmp = Bb * (Rt + 4) * W2 * (10 * C + (S + C)) * 4               # f32 temporaries
        return 2 * (xb_blk + halo_blk + xs_blk + out_blk + w_bytes) + pad_scr + tmp

    bb_cands = [d for d in range(min(B, 8), 0, -1) if B % d == 0]
    rt_cands = [d for d in range(H2, 1, -1) if H2 % d == 0 and d % 2 == 0]
    if not rt_cands:
        raise ValueError("H/2 must have an even divisor >= 2 (H divisible by 4)")
    feasible = [(Bb, Rt) for Bb in bb_cands for Rt in rt_cands if est(Bb, Rt) <= budget]
    if not feasible:
        feasible = [(1, rt_cands[-1])]

    def key(t):
        Bb, Rt = t
        steps = (B // Bb) * (H2 // Rt)
        return (steps >= 4, steps >= 2, Bb * Rt * W2, Rt)

    return max(feasible, key=key)


def make_wfu_params(key, dim_big, dim_small, dtype=jnp.float32):
    """Deterministic synthetic parameters (shapes follow WFU.__init__)."""
    C, S = dim_big, dim_small
    ks = jax.random.split(key, 8)

    def w(k, shape, fan_in):
        return (jax.random.normal(k, shape, dtype) / jnp.sqrt(float(fan_in))).astype(dtype)

    rbw1 = w(ks[0], (3, 3, C, C), 9 * C)          # RB conv1 (HWIO)
    rbb1 = w(ks[1], (1, C), C)
    rbw2 = w(ks[2], (3, 3, C, C), 9 * C)          # RB conv2 (HWIO)
    rbb2 = w(ks[3], (1, C), C)
    ctw1 = w(ks[4], (S + C, S + C), S + C)        # channel_transformation conv1 (1x1)
    ctb1 = w(ks[5], (1, S + C), S + C)
    ctw2 = w(ks[6], (S + C, 3 * C), S + C)        # channel_transformation conv2 (1x1)
    ctb2 = w(ks[7], (1, 3 * C), S + C)
    return (rbw1, rbb1, rbw2, rbb2, ctw1, ctb1, ctw2, ctb2)


def wfu_forward(x_big, x_small, params, *, vmem_budget_bytes=None, vmem_limit_bytes=None):
    B, H, W, C = x_big.shape
    assert H % 2 == 0 and W % 2 == 0
    H2, W2 = H // 2, W // 2
    S = x_small.shape[-1]
    assert x_small.shape == (B, H2, W2, S)
    assert H2 % 2 == 0, "row-halo fetch needs H/2 even (H divisible by 4)"
    rbw1, rbb1, rbw2, rbb2, ctw1, ctb1, ctw2, ctb2 = params

    # ---- host-side weight prep: bf16 matmul operands, f32 biases -------------
    # (for production also pad C / S+C to multiples of 128 here for lane density)
    rbw1f = rbw1.reshape(9, C, C).astype(jnp.bfloat16)
    rbw2f = rbw2.reshape(9, C, C).astype(jnp.bfloat16)
    ctw1s = ctw1[:S].astype(jnp.bfloat16)          # multiplies x_small
    ctw1a = ctw1[S:].astype(jnp.bfloat16)          # multiplies a
    ctw2b = ctw2.astype(jnp.bfloat16)
    rbb1f = rbb1.astype(jnp.float32)
    rbb2f = rbb2.astype(jnp.float32)
    ctb1f = ctb1.astype(jnp.float32)
    ctb2f = ctb2.astype(jnp.float32)
    weights = (rbw1f, rbb1f, rbw2f, rbb2f, ctw1s, ctw1a, ctb1f, ctw2b, ctb2f)
    w_bytes = sum(int(w.size) * w.dtype.itemsize for w in weights)

    budget, limit = _vmem_budget_and_limit(vmem_budget_bytes, vmem_limit_bytes)
    Bb, Rt = _pick_tiling(B, H2, W2, C, S,
                          in_bytes=x_big.dtype.itemsize, w_bytes=w_bytes, budget=budget)
    nb, n_rt = B // Bb, H2 // Rt

    # free row-major view: (B, H, W, C) -> (B, H2, 2, W2, 2C); no HBM copy
    xb_view = x_big.reshape(B, H2, 2, W2, 2 * C)

    half_rt = Rt // 2
    max_halo_blk = H2 // 2 - 1

    xb_main_spec = pl.BlockSpec((Bb, Rt, 2, W2, 2 * C), lambda b, r: (b, r, 0, 0, 0))
    # 2-row halo views of the same array; clamped at the global boundaries
    # (the kernel zeroes them there, matching the convs' zero padding).
    xb_top_spec = pl.BlockSpec(
        (Bb, 2, 2, W2, 2 * C),
        lambda b, r: (b, jnp.maximum(r * half_rt - 1, 0), 0, 0, 0))
    xb_bot_spec = pl.BlockSpec(
        (Bb, 2, 2, W2, 2 * C),
        lambda b, r: (b, jnp.minimum((r + 1) * half_rt, max_halo_blk), 0, 0, 0))
    xs_spec = pl.BlockSpec((Bb, Rt, W2, S), lambda b, r: (b, r, 0, 0))

    def wspec(arr):
        # NOTE: constant index map -> fetched once; pipeline_mode=pl.Buffered(1)
        # would also drop the second VMEM buffer (left at default for portability).
        return pl.BlockSpec(arr.shape, lambda b, r, _n=arr.ndim: (0,) * _n)

    out_spec = pl.BlockSpec((Bb, Rt, 2, W2, 2 * C), lambda b, r: (b, r, 0, 0, 0))

    Wpad = W2 + 2 * _HALO_W

    out_view = pl.pallas_call(
        _wfu_kernel,
        out_shape=jax.ShapeDtypeStruct((B, H2, 2, W2, 2 * C), x_big.dtype),
        grid=(nb, n_rt),
        in_specs=[xb_main_spec, xb_top_spec, xb_bot_spec, xs_spec]
                + [wspec(w) for w in weights],
        out_specs=out_spec,
        scratch_shapes=[pltpu.VMEM((Bb, Rt + 4, Wpad, C), jnp.bfloat16)],
        compiler_params=pltpu.CompilerParams(
            dimension_semantics=("parallel", "parallel"),   # batch x row tiles -> 2 TCs
            vmem_limit_bytes=limit),
    )(xb_view, xb_view, xb_view, x_small, *weights)

    # free reshape back to interleaved pixels
    return out_view.reshape(B, H, W, C)


def wfu_reference(x_big, x_small, params):
    """Pure-JAX reference (same NHWC semantics as the PyTorch module), full f32."""
    rbw1, rbb1, rbw2, rbb2, ctw1, ctb1, ctw2, ctb2 = params
    B, H, W, C = x_big.shape
    p00 = x_big[:, 0::2, 0::2, :]
    p01 = x_big[:, 0::2, 1::2, :]
    p10 = x_big[:, 1::2, 0::2, :]
    p11 = x_big[:, 1::2, 1::2, :]
    a = (p00 + p01 + p10 + p11) * 0.25
    h = (p00 - p01 + p10 - p11) * 0.25
    v = (p00 + p01 - p10 - p11) * 0.25
    d = (p00 - p01 - p10 + p11) * 0.25
    s = h + v + d

    def conv3(x, w, b):
        y = jax.lax.conv_general_dilated(
            x, w, (1, 1), 'SAME', dimension_numbers=('NHWC', 'HWIO', 'NHWC'))
        return y + b.reshape(1, 1, 1, -1)

    hvd = conv3(jnp.maximum(conv3(s, rbw1, rbb1), 0.0), rbw2, rbb2)
    t = jnp.concatenate([x_small, a], axis=-1)
    z1 = jnp.maximum(jnp.einsum('bhwc,cd->bhwd', t, ctw1) + ctb1.reshape(1, 1, 1, -1), 0.0)
    z2 = jnp.einsum('bhwc,cd->bhwd', z1, ctw2) + ctb2.reshape(1, 1, 1, -1)
    c0, c1, c2, c3 = hvd, z2[..., 0:C], z2[..., C:2 * C], z2[..., 2 * C:3 * C]
    o00 = c0 + c1 + c2 + c3
    o01 = c0 - c1 + c2 - c3
    o10 = c0 + c1 - c2 - c3
    o11 = c0 - c1 - c2 + c3
    top = jnp.stack([o00, o01], axis=3)
    bot = jnp.stack([o10, o11], axis=3)
    return jnp.stack([top, bot], axis=2).reshape(B, H, W, C)


if __name__ == "__main__":
    key = jax.random.PRNGKey(0)
    B, C_big, C_small, H, W = 2, 4, 4, 16, 16

    kx, ks, kp = jax.random.split(key, 3)
    x_big = jax.random.normal(kx, (B, H, W, C_big), jnp.float32)
    x_small = jax.random.normal(ks, (B, H // 2, W // 2, C_small), jnp.float32)
    params = make_wfu_params(kp, C_big, C_small)

    out = jax.block_until_ready(jax.jit(wfu_forward)(x_big, x_small, params))

    ref = wfu_reference(x_big, x_small, params)
    assert out.shape == (B, H, W, C_big)
    err = float(jnp.max(jnp.abs(out - ref)))
    # bf16 MXU operands (f32 accumulation) vs an all-f32 reference -> relaxed tolerance.
    assert jnp.allclose(out, ref, atol=5e-2, rtol=5e-2), err
    print("KERNEL_OK")
</pallas_src>

<mosaic_0001>
module attributes {stable_mosaic.version = 11 : i64} {
  func.func @_wfu_kernel(%arg0: i32, %arg1: i32, %arg2: memref<1x4x2x8x8xf32, #tpu.memory_space<vmem>>, %arg3: memref<1x2x2x8x8xf32, #tpu.memory_space<vmem>>, %arg4: memref<1x2x2x8x8xf32, #tpu.memory_space<vmem>>, %arg5: memref<1x4x8x4xf32, #tpu.memory_space<vmem>>, %arg6: memref<9x4x4xbf16, #tpu.memory_space<vmem>>, %arg7: memref<1x4xf32, #tpu.memory_space<vmem>>, %arg8: memref<9x4x4xbf16, #tpu.memory_space<vmem>>, %arg9: memref<1x4xf32, #tpu.memory_space<vmem>>, %arg10: memref<4x8xbf16, #tpu.memory_space<vmem>>, %arg11: memref<4x8xbf16, #tpu.memory_space<vmem>>, %arg12: memref<1x8xf32, #tpu.memory_space<vmem>>, %arg13: memref<8x12xbf16, #tpu.memory_space<vmem>>, %arg14: memref<1x12xf32, #tpu.memory_space<vmem>>, %arg15: memref<1x4x2x8x8xf32, #tpu.memory_space<vmem>>, %arg16: memref<1x8x24x4xbf16, #tpu.memory_space<vmem>>) attributes {dimension_semantics = [#tpu.dimension_semantics<parallel>, #tpu.dimension_semantics<parallel>], iteration_bounds = array<i64: 2, 2>, scalar_prefetch = 0 : i64, scratch_operands = 1 : i64, tpu.core_type = #tpu.core_type<tc>, window_params = [{transform_indices = @transform_0, window_bounds = array<i64: 1, 4, 2, 8, 8>}, {transform_indices = @transform_1, window_bounds = array<i64: 1, 2, 2, 8, 8>}, {transform_indices = @transform_2, window_bounds = array<i64: 1, 2, 2, 8, 8>}, {transform_indices = @transform_3, window_bounds = array<i64: 1, 4, 8, 4>}, {pipeline_mode = #tpu.pipeline_mode<synchronous>, transform_indices = @transform_4, window_bounds = array<i64: 9, 4, 4>}, {pipeline_mode = #tpu.pipeline_mode<synchronous>, transform_indices = @transform_5, window_bounds = array<i64: 1, 4>}, {pipeline_mode = #tpu.pipeline_mode<synchronous>, transform_indices = @transform_6, window_bounds = array<i64: 9, 4, 4>}, {pipeline_mode = #tpu.pipeline_mode<synchronous>, transform_indices = @transform_7, window_bounds = array<i64: 1, 4>}, {pipeline_mode = #tpu.pipeline_mode<synchronous>, transform_indices = @transform_8, window_bounds = array<i64: 4, 8>}, {pipeline_mode = #tpu.pipeline_mode<synchronous>, transform_indices = @transform_9, window_bounds = array<i64: 4, 8>}, {pipeline_mode = #tpu.pipeline_mode<synchronous>, transform_indices = @transform_10, window_bounds = array<i64: 1, 8>}, {pipeline_mode = #tpu.pipeline_mode<synchronous>, transform_indices = @transform_11, window_bounds = array<i64: 8, 12>}, {pipeline_mode = #tpu.pipeline_mode<synchronous>, transform_indices = @transform_12, window_bounds = array<i64: 1, 12>}, {transform_indices = @transform_13, window_bounds = array<i64: 1, 4, 2, 8, 8>}]} {
    %cst = arith.constant 0.000000e+00 : bf16
    %0 = vector.broadcast %cst : bf16 to vector<1x8x8x4xbf16>
    %c0 = arith.constant 0 : index
    %c0_0 = arith.constant 0 : index
    %c0_1 = arith.constant 0 : index
    %c0_2 = arith.constant 0 : index
    %1 = vector.load %arg16[%c0, %c0_0, %c0_1, %c0_2] : memref<1x8x24x4xbf16, #tpu.memory_space<vmem>>, vector<1x8x8x4xbf16>
    tpu.vector_store %arg16[%c0, %c0_0, %c0_1, %c0_2], %0 {strides = array<i32>} : memref<1x8x24x4xbf16, #tpu.memory_space<vmem>>, vector<1x8x8x4xbf16>,
    %cst_3 = arith.constant 0.000000e+00 : bf16
    %2 = vector.broadcast %cst_3 : bf16 to vector<1x8x8x4xbf16>
    %c0_4 = arith.constant 0 : index
    %c0_5 = arith.constant 0 : index
    %c16 = arith.constant 16 : index
    %c0_6 = arith.constant 0 : index
    %3 = vector.load %arg16[%c0_4, %c0_5, %c16, %c0_6] : memref<1x8x24x4xbf16, #tpu.memory_space<vmem>>, vector<1x8x8x4xbf16>
    tpu.vector_store %arg16[%c0_4, %c0_5, %c16, %c0_6], %2 {strides = array<i32>} : memref<1x8x24x4xbf16, #tpu.memory_space<vmem>>, vector<1x8x8x4xbf16>,
    %c0_7 = arith.constant 0 : index
    %c0_8 = arith.constant 0 : index
    %c0_9 = arith.constant 0 : index
    %c0_10 = arith.constant 0 : index
    %c0_11 = arith.constant 0 : index
    %4 = vector.load %arg2[%c0_7, %c0_8, %c0_9, %c0_10, %c0_11] : memref<1x4x2x8x8xf32, #tpu.memory_space<vmem>>, vector<1x4x2x8x8xf32>
    %5 = vector.extract_strided_slice %4 {offsets = [0, 0, 0, 0, 0], sizes = [1, 4, 1, 8, 8], strides = [1, 1, 1, 1, 1]} : vector<1x4x2x8x8xf32> to vector<1x4x1x8x8xf32>
    %6 = vector.shape_cast %5 : vector<1x4x1x8x8xf32> to vector<1x4x8x8xf32>
    %7 = vector.extract_strided_slice %4 {offsets = [0, 0, 1, 0, 0], sizes = [1, 4, 1, 8, 8], strides = [1, 1, 1, 1, 1]} : vector<1x4x2x8x8xf32> to vector<1x4x1x8x8xf32>
    %8 = vector.shape_cast %7 : vector<1x4x1x8x8xf32> to vector<1x4x8x8xf32>
    %9 = vector.extract_strided_slice %6 {offsets = [0, 0, 0, 0], sizes = [1, 4, 8, 4], strides = [1, 1, 1, 1]} : vector<1x4x8x8xf32> to vector<1x4x8x4xf32>
    %10 = vector.extract_strided_slice %6 {offsets = [0, 0, 0, 4], sizes = [1, 4, 8, 4], strides = [1, 1, 1, 1]} : vector<1x4x8x8xf32> to vector<1x4x8x4xf32>
    %11 = vector.extract_strided_slice %8 {offsets = [0, 0, 0, 0], sizes = [1, 4, 8, 4], strides = [1, 1, 1, 1]} : vector<1x4x8x8xf32> to vector<1x4x8x4xf32>
    %12 = vector.extract_strided_slice %8 {offsets = [0, 0, 0, 4], sizes = [1, 4, 8, 4], strides = [1, 1, 1, 1]} : vector<1x4x8x8xf32> to vector<1x4x8x4xf32>
    %13 = arith.addf %9, %10 : vector<1x4x8x4xf32>
    %14 = arith.addf %13, %11 : vector<1x4x8x4xf32>
    %15 = arith.addf %14, %12 : vector<1x4x8x4xf32>
    %cst_12 = arith.constant 2.500000e-01 : f32
    %16 = vector.broadcast %cst_12 : f32 to vector<1x4x8x4xf32>
    %17 = arith.mulf %15, %16 : vector<1x4x8x4xf32>
    %18 = arith.subf %9, %17 : vector<1x4x8x4xf32>
    %c0_13 = arith.constant 0 : index
    %c0_14 = arith.constant 0 : index
    %c0_15 = arith.constant 0 : index
    %c0_16 = arith.constant 0 : index
    %c0_17 = arith.constant 0 : index
    %19 = vector.load %arg3[%c0_13, %c0_14, %c0_15, %c0_16, %c0_17] : memref<1x2x2x8x8xf32, #tpu.memory_space<vmem>>, vector<1x2x2x8x8xf32>
    %20 = vector.extract_strided_slice %19 {offsets = [0, 0, 0, 0, 0], sizes = [1, 2, 1, 8, 8], strides = [1, 1, 1, 1, 1]} : vector<1x2x2x8x8xf32> to vector<1x2x1x8x8xf32>
    %21 = vector.shape_cast %20 : vector<1x2x1x8x8xf32> to vector<1x2x8x8xf32>
    %22 = vector.extract_strided_slice %19 {offsets = [0, 0, 1, 0, 0], sizes = [1, 2, 1, 8, 8], strides = [1, 1, 1, 1, 1]} : vector<1x2x2x8x8xf32> to vector<1x2x1x8x8xf32>
    %23 = vector.shape_cast %22 : vector<1x2x1x8x8xf32> to vector<1x2x8x8xf32>
    %24 = vector.extract_strided_slice %21 {offsets = [0, 0, 0, 0], sizes = [1, 2, 8, 4], strides = [1, 1, 1, 1]} : vector<1x2x8x8xf32> to vector<1x2x8x4xf32>
    %25 = vector.extract_strided_slice %21 {offsets = [0, 0, 0, 4], sizes = [1, 2, 8, 4], strides = [1, 1, 1, 1]} : vector<1x2x8x8xf32> to vector<1x2x8x4xf32>
    %26 = vector.extract_strided_slice %23 {offsets = [0, 0, 0, 0], sizes = [1, 2, 8, 4], strides = [1, 1, 1, 1]} : vector<1x2x8x8xf32> to vector<1x2x8x4xf32>
    %27 = vector.extract_strided_slice %23 {offsets = [0, 0, 0, 4], sizes = [1, 2, 8, 4], strides = [1, 1, 1, 1]} : vector<1x2x8x8xf32> to vector<1x2x8x4xf32>
    %28 = arith.addf %24, %25 : vector<1x2x8x4xf32>
    %29 = arith.addf %28, %26 : vector<1x2x8x4xf32>
    %30 = arith.addf %29, %27 : vector<1x2x8x4xf32>
    %cst_18 = arith.constant 2.500000e-01 : f32
    %31 = vector.broadcast %cst_18 : f32 to vector<1x2x8x4xf32>
    %32 = arith.mulf %30, %31 : vector<1x2x8x4xf32>
    %33 = arith.subf %24, %32 : vector<1x2x8x4xf32>
    %c0_19 = arith.constant 0 : index
    %c0_20 = arith.constant 0 : index
    %c0_21 = arith.constant 0 : index
    %c0_22 = arith.constant 0 : index
    %c0_23 = arith.constant 0 : index
    %34 = vector.load %arg4[%c0_19, %c0_20, %c0_21, %c0_22, %c0_23] : memref<1x2x2x8x8xf32, #tpu.memory_space<vmem>>, vector<1x2x2x8x8xf32>
    %35 = vector.extract_strided_slice %34 {offsets = [0, 0, 0, 0, 0], sizes = [1, 2, 1, 8, 8], strides = [1, 1, 1, 1, 1]} : vector<1x2x2x8x8xf32> to vector<1x2x1x8x8xf32>
    %36 = vector.shape_cast %35 : vector<1x2x1x8x8xf32> to vector<1x2x8x8xf32>
    %37 = vector.extract_strided_slice %34 {offsets = [0, 0, 1, 0, 0], sizes = [1, 2, 1, 8, 8], strides = [1, 1, 1, 1, 1]} : vector<1x2x2x8x8xf32> to vector<1x2x1x8x8xf32>
    %38 = vector.shape_cast %37 : vector<1x2x1x8x8xf32> to vector<1x2x8x8xf32>
    %39 = vector.extract_strided_slice %36 {offsets = [0, 0, 0, 0], sizes = [1, 2, 8, 4], strides = [1, 1, 1, 1]} : vector<1x2x8x8xf32> to vector<1x2x8x4xf32>
    %40 = vector.extract_strided_slice %36 {offsets = [0, 0, 0, 4], sizes = [1, 2, 8, 4], strides = [1, 1, 1, 1]} : vector<1x2x8x8xf32> to vector<1x2x8x4xf32>
    %41 = vector.extract_strided_slice %38 {offsets = [0, 0, 0, 0], sizes = [1, 2, 8, 4], strides = [1, 1, 1, 1]} : vector<1x2x8x8xf32> to vector<1x2x8x4xf32>
    %42 = vector.extract_strided_slice %38 {offsets = [0, 0, 0, 4], sizes = [1, 2, 8, 4], strides = [1, 1, 1, 1]} : vector<1x2x8x8xf32> to vector<1x2x8x4xf32>
    %43 = arith.addf %39, %40 : vector<1x2x8x4xf32>
    %44 = arith.addf %43, %41 : vector<1x2x8x4xf32>
    %45 = arith.addf %44, %42 : vector<1x2x8x4xf32>
    %cst_24 = arith.constant 2.500000e-01 : f32
    %46 = vector.broadcast %cst_24 : f32 to vector<1x2x8x4xf32>
    %47 = arith.mulf %45, %46 : vector<1x2x8x4xf32>
    %48 = arith.subf %39, %47 : vector<1x2x8x4xf32>
    %c0_i32 = arith.constant 0 : i32
    %49 = arith.cmpi eq, %arg1, %c0_i32 : i32
    %cst_25 = arith.constant 0.000000e+00 : f32
    %50 = vector.broadcast %cst_25 : f32 to vector<1x2x8x4xf32>
    %51 = arith.select %49, %50, %33 : vector<1x2x8x4xf32>
    %c1_i32 = arith.constant 1 : i32
    %52 = arith.cmpi eq, %arg1, %c1_i32 : i32
    %cst_26 = arith.constant 0.000000e+00 : f32
    %53 = vector.broadcast %cst_26 : f32 to vector<1x2x8x4xf32>
    %54 = arith.select %52, %53, %48 : vector<1x2x8x4xf32>
    %55 = arith.truncf %51 : vector<1x2x8x4xf32> to vector<1x2x8x4xbf16>
    %c0_27 = arith.constant 0 : index
    %c0_28 = arith.constant 0 : index
    %c8 = arith.constant 8 : index
    %c0_29 = arith.constant 0 : index
    %56 = vector.load %arg16[%c0_27, %c0_28, %c8, %c0_29] : memref<1x8x24x4xbf16, #tpu.memory_space<vmem>>, vector<1x2x8x4xbf16>
    tpu.vector_store %arg16[%c0_27, %c0_28, %c8, %c0_29], %55 {strides = array<i32>} : memref<1x8x24x4xbf16, #tpu.memory_space<vmem>>, vector<1x2x8x4xbf16>,
    %57 = arith.truncf %18 : vector<1x4x8x4xf32> to vector<1x4x8x4xbf16>
    %c0_30 = arith.constant 0 : index
    %c2 = arith.constant 2 : index
    %c8_31 = arith.constant 8 : index
    %c0_32 = arith.constant 0 : index
    %58 = vector.load %arg16[%c0_30, %c2, %c8_31, %c0_32] : memref<1x8x24x4xbf16, #tpu.memory_space<vmem>>, vector<1x4x8x4xbf16>
    tpu.vector_store %arg16[%c0_30, %c2, %c8_31, %c0_32], %57 {strides = array<i32>} : memref<1x8x24x4xbf16, #tpu.memory_space<vmem>>, vector<1x4x8x4xbf16>,
    %59 = arith.truncf %54 : vector<1x2x8x4xf32> to vector<1x2x8x4xbf16>
    %c0_33 = arith.constant 0 : index
    %c6 = arith.constant 6 : index
    %c8_34 = arith.constant 8 : index
    %c0_35 = arith.constant 0 : index
    %60 = vector.load %arg16[%c0_33, %c6, %c8_34, %c0_35] : memref<1x8x24x4xbf16, #tpu.memory_space<vmem>>, vector<1x2x8x4xbf16>
    tpu.vector_store %arg16[%c0_33, %c6, %c8_34, %c0_35], %59 {strides = array<i32>} : memref<1x8x24x4xbf16, #tpu.memory_space<vmem>>, vector<1x2x8x4xbf16>,
    %c0_36 = arith.constant 0 : index
    %c0_37 = arith.constant 0 : index
    %c0_38 = arith.constant 0 : index
    %c0_39 = arith.constant 0 : index
    %61 = vector.load %arg16[%c0_36, %c0_37, %c0_38, %c0_39] : memref<1x8x24x4xbf16, #tpu.memory_space<vmem>>, vector<1x8x24x4xbf16>
    %cst_40 = arith.constant 0.000000e+00 : f32
    %62 = vector.broadcast %cst_40 : f32 to vector<48x4xf32>
    %63 = vector.extract_strided_slice %61 {offsets = [0, 0, 7, 0], sizes = [1, 6, 8, 4], strides = [1, 1, 1, 1]} : vector<1x8x24x4xbf16> to vector<1x6x8x4xbf16>
    %64 = vector.shape_cast %63 : vector<1x6x8x4xbf16> to vector<48x4xbf16>
    %c0_41 = arith.constant 0 : index
    %c0_42 = arith.constant 0 : index
    %c0_43 = arith.constant 0 : index
    %65 = vector.load %arg6[%c0_41, %c0_42, %c0_43] : memref<9x4x4xbf16, #tpu.memory_space<vmem>>, vector<1x4x4xbf16>
    %66 = vector.shape_cast %65 : vector<1x4x4xbf16> to vector<4x4xbf16>
    %cst_44 = arith.constant dense<0.000000e+00> : vector<48x4xf32>
    %67 = tpu.matmul %64, %66, %cst_44 {dimension_numbers = #tpu.dot_dimension_numbers<[1], [0], [0], [1], [0, 0, 1, 1], [], []>} : vector<48x4xbf16>, vector<4x4xbf16>, vector<48x4xf32> -> vector<48x4xf32>
    %68 = arith.addf %62, %67 : vector<48x4xf32>
    %69 = vector.extract_strided_slice %61 {offsets = [0, 0, 8, 0], sizes = [1, 6, 8, 4], strides = [1, 1, 1, 1]} : vector<1x8x24x4xbf16> to vector<1x6x8x4xbf16>
    %70 = vector.shape_cast %69 : vector<1x6x8x4xbf16> to vector<48x4xbf16>
    %c1 = arith.constant 1 : index
    %c0_45 = arith.constant 0 : index
    %c0_46 = arith.constant 0 : index
    %71 = vector.load %arg6[%c1, %c0_45, %c0_46] : memref<9x4x4xbf16, #tpu.memory_space<vmem>>, vector<1x4x4xbf16>
    %72 = vector.shape_cast %71 : vector<1x4x4xbf16> to vector<4x4xbf16>
    %cst_47 = arith.constant dense<0.000000e+00> : vector<48x4xf32>
    %73 = tpu.matmul %70, %72, %cst_47 {dimension_numbers = #tpu.dot_dimension_numbers<[1], [0], [0], [1], [0, 0, 1, 1], [], []>} : vector<48x4xbf16>, vector<4x4xbf16>, vector<48x4xf32> -> vector<48x4xf32>
    %74 = arith.addf %68, %73 : vector<48x4xf32>
    %75 = vector.extract_strided_slice %61 {offsets = [0, 0, 9, 0], sizes = [1, 6, 8, 4], strides = [1, 1, 1, 1]} : vector<1x8x24x4xbf16> to vector<1x6x8x4xbf16>
    %76 = vector.shape_cast %75 : vector<1x6x8x4xbf16> to vector<48x4xbf16>
    %c2_48 = arith.constant 2 : index
    %c0_49 = arith.constant 0 : index
    %c0_50 = arith.constant 0 : index
    %77 = vector.load %arg6[%c2_48, %c0_49, %c0_50] : memref<9x4x4xbf16, #tpu.memory_space<vmem>>, vector<1x4x4xbf16>
    %78 = vector.shape_cast %77 : vector<1x4x4xbf16> to vector<4x4xbf16>
    %cst_51 = arith.constant dense<0.000000e+00> : vector<48x4xf32>
    %79 = tpu.matmul %76, %78, %cst_51 {dimension_numbers = #tpu.dot_dimension_numbers<[1], [0], [0], [1], [0, 0, 1, 1], [], []>} : vector<48x4xbf16>, vector<4x4xbf16>, vector<48x4xf32> -> vector<48x4xf32>
    %80 = arith.addf %74, %79 : vector<48x4xf32>
    %81 = vector.extract_strided_slice %61 {offsets = [0, 1, 7, 0], sizes = [1, 6, 8, 4], strides = [1, 1, 1, 1]} : vector<1x8x24x4xbf16> to vector<1x6x8x4xbf16>
    %82 = vector.shape_cast %81 : vector<1x6x8x4xbf16> to vector<48x4xbf16>
    %c3 = arith.constant 3 : index
    %c0_52 = arith.constant 0 : index
    %c0_53 = arith.constant 0 : index
    %83 = vector.load %arg6[%c3, %c0_52, %c0_53] : memref<9x4x4xbf16, #tpu.memory_space<vmem>>, vector<1x4x4xbf16>
    %84 = vector.shape_cast %83 : vector<1x4x4xbf16> to vector<4x4xbf16>
    %cst_54 = arith.constant dense<0.000000e+00> : vector<48x4xf32>
    %85 = tpu.matmul %82, %84, %cst_54 {dimension_numbers = #tpu.dot_dimension_numbers<[1], [0], [0], [1], [0, 0, 1, 1], [], []>} : vector<48x4xbf16>, vector<4x4xbf16>, vector<48x4xf32> -> vector<48x4xf32>
    %86 = arith.addf %80, %85 : vector<48x4xf32>
    %87 = vector.extract_strided_slice %61 {offsets = [0, 1, 8, 0], sizes = [1, 6, 8, 4], strides = [1, 1, 1, 1]} : vector<1x8x24x4xbf16> to vector<1x6x8x4xbf16>
    %88 = vector.shape_cast %87 : vector<1x6x8x4xbf16> to vector<48x4xbf16>
    %c4 = arith.constant 4 : index
    %c0_55 = arith.constant 0 : index
    %c0_56 = arith.constant 0 : index
    %89 = vector.load %arg6[%c4, %c0_55, %c0_56] : memref<9x4x4xbf16, #tpu.memory_space<vmem>>, vector<1x4x4xbf16>
    %90 = vector.shape_cast %89 : vector<1x4x4xbf16> to vector<4x4xbf16>
    %cst_57 = arith.constant dense<0.000000e+00> : vector<48x4xf32>
    %91 = tpu.matmul %88, %90, %cst_57 {dimension_numbers = #tpu.dot_dimension_numbers<[1], [0], [0], [1], [0, 0, 1, 1], [], []>} : vector<48x4xbf16>, vector<4x4xbf16>, vector<48x4xf32> -> vector<48x4xf32>
    %92 = arith.addf %86, %91 : vector<48x4xf32>
    %93 = vector.extract_strided_slice %61 {offsets = [0, 1, 9, 0], sizes = [1, 6, 8, 4], strides = [1, 1, 1, 1]} : vector<1x8x24x4xbf16> to vector<1x6x8x4xbf16>
    %94 = vector.shape_cast %93 : vector<1x6x8x4xbf16> to vector<48x4xbf16>
    %c5 = arith.constant 5 : index
    %c0_58 = arith.constant 0 : index
    %c0_59 = arith.constant 0 : index
    %95 = vector.load %arg6[%c5, %c0_58, %c0_59] : memref<9x4x4xbf16, #tpu.memory_space<vmem>>, vector<1x4x4xbf16>
    %96 = vector.shape_cast %95 : vector<1x4x4xbf16> to vector<4x4xbf16>
    %cst_60 = arith.constant dense<0.000000e+00> : vector<48x4xf32>
    %97 = tpu.matmul %94, %96, %cst_60 {dimension_numbers = #tpu.dot_dimension_numbers<[1], [0], [0], [1], [0, 0, 1, 1], [], []>} : vector<48x4xbf16>, vector<4x4xbf16>, vector<48x4xf32> -> vector<48x4xf32>
    %98 = arith.addf %92, %97 : vector<48x4xf32>
    %99 = vector.extract_strided_slice %61 {offsets = [0, 2, 7, 0], sizes = [1, 6, 8, 4], strides = [1, 1, 1, 1]} : vector<1x8x24x4xbf16> to vector<1x6x8x4xbf16>
    %100 = vector.shape_cast %99 : vector<1x6x8x4xbf16> to vector<48x4xbf16>
    %c6_61 = arith.constant 6 : index
    %c0_62 = arith.constant 0 : index
    %c0_63 = arith.constant 0 : index
    %101 = vector.load %arg6[%c6_61, %c0_62, %c0_63] : memref<9x4x4xbf16, #tpu.memory_space<vmem>>, vector<1x4x4xbf16>
    %102 = vector.shape_cast %101 : vector<1x4x4xbf16> to vector<4x4xbf16>
    %cst_64 = arith.constant dense<0.000000e+00> : vector<48x4xf32>
    %103 = tpu.matmul %100, %102, %cst_64 {dimension_numbers = #tpu.dot_dimension_numbers<[1], [0], [0], [1], [0, 0, 1, 1], [], []>} : vector<48x4xbf16>, vector<4x4xbf16>, vector<48x4xf32> -> vector<48x4xf32>
    %104 = arith.addf %98, %103 : vector<48x4xf32>
    %105 = vector.extract_strided_slice %61 {offsets = [0, 2, 8, 0], sizes = [1, 6, 8, 4], strides = [1, 1, 1, 1]} : vector<1x8x24x4xbf16> to vector<1x6x8x4xbf16>
    %106 = vector.shape_cast %105 : vector<1x6x8x4xbf16> to vector<48x4xbf16>
    %c7 = arith.constant 7 : index
    %c0_65 = arith.constant 0 : index
    %c0_66 = arith.constant 0 : index
    %107 = vector.load %arg6[%c7, %c0_65, %c0_66] : memref<9x4x4xbf16, #tpu.memory_space<vmem>>, vector<1x4x4xbf16>
    %108 = vector.shape_cast %107 : vector<1x4x4xbf16> to vector<4x4xbf16>
    %cst_67 = arith.constant dense<0.000000e+00> : vector<48x4xf32>
    %109 = tpu.matmul %106, %108, %cst_67 {dimension_numbers = #tpu.dot_dimension_numbers<[1], [0], [0], [1], [0, 0, 1, 1], [], []>} : vector<48x4xbf16>, vector<4x4xbf16>, vector<48x4xf32> -> vector<48x4xf32>
    %110 = arith.addf %104, %109 : vector<48x4xf32>
    %111 = vector.extract_strided_slice %61 {offsets = [0, 2, 9, 0], sizes = [1, 6, 8, 4], strides = [1, 1, 1, 1]} : vector<1x8x24x4xbf16> to vector<1x6x8x4xbf16>
    %112 = vector.shape_cast %111 : vector<1x6x8x4xbf16> to vector<48x4xbf16>
    %c8_68 = arith.constant 8 : index
    %c0_69 = arith.constant 0 : index
    %c0_70 = arith.constant 0 : index
    %113 = vector.load %arg6[%c8_68, %c0_69, %c0_70] : memref<9x4x4xbf16, #tpu.memory_space<vmem>>, vector<1x4x4xbf16>
    %114 = vector.shape_cast %113 : vector<1x4x4xbf16> to vector<4x4xbf16>
    %cst_71 = arith.constant dense<0.000000e+00> : vector<48x4xf32>
    %115 = tpu.matmul %112, %114, %cst_71 {dimension_numbers = #tpu.dot_dimension_numbers<[1], [0], [0], [1], [0, 0, 1, 1], [], []>} : vector<48x4xbf16>, vector<4x4xbf16>, vector<48x4xf32> -> vector<48x4xf32>
    %116 = arith.addf %110, %115 : vector<48x4xf32>
    %c0_72 = arith.constant 0 : index
    %c0_73 = arith.constant 0 : index
    %117 = vector.load %arg7[%c0_72, %c0_73] : memref<1x4xf32, #tpu.memory_space<vmem>>, vector<1x4xf32>
    %118 = vector.broadcast %117 : vector<1x4xf32> to vector<48x4xf32>
    %119 = arith.addf %116, %118 : vector<48x4xf32>
    %120 = vector.shape_cast %119 : vector<48x4xf32> to vector<1x6x8x4xf32>
    %cst_74 = arith.constant 0.000000e+00 : f32
    %121 = vector.broadcast %cst_74 : f32 to vector<1x6x8x4xf32>
    %122 = arith.maximumf %120, %121 : vector<1x6x8x4xf32>
    %123 = arith.truncf %122 : vector<1x6x8x4xf32> to vector<1x6x8x4xbf16>
    %c0_75 = arith.constant 0 : index
    %c0_76 = arith.constant 0 : index
    %c8_77 = arith.constant 8 : index
    %c0_78 = arith.constant 0 : index
    %124 = vector.load %arg16[%c0_75, %c0_76, %c8_77, %c0_78] : memref<1x8x24x4xbf16, #tpu.memory_space<vmem>>, vector<1x6x8x4xbf16>
    tpu.vector_store %arg16[%c0_75, %c0_76, %c8_77, %c0_78], %123 {strides = array<i32>} : memref<1x8x24x4xbf16, #tpu.memory_space<vmem>>, vector<1x6x8x4xbf16>,
    %c0_i32_79 = arith.constant 0 : i32
    %125 = arith.cmpi eq, %arg1, %c0_i32_79 : i32
    %126 = arith.extui %125 : i1 to i32
    %c0_i32_80 = arith.constant 0 : i32
    %127 = arith.cmpi ne, %126, %c0_i32_80 : i32
    scf.if %127 {
      %cst_154 = arith.constant 0.000000e+00 : bf16
      %232 = vector.broadcast %cst_154 : bf16 to vector<1x1x8x4xbf16>
      %c0_155 = arith.constant 0 : index
      %c0_156 = arith.constant 0 : index
      %c8_157 = arith.constant 8 : index
      %c0_158 = arith.constant 0 : index
      %233 = vector.load %arg16[%c0_155, %c0_156, %c8_157, %c0_158] : memref<1x8x24x4xbf16, #tpu.memory_space<vmem>>, vector<1x1x8x4xbf16>
      tpu.vector_store %arg16[%c0_155, %c0_156, %c8_157, %c0_158], %232 {strides = array<i32>} : memref<1x8x24x4xbf16, #tpu.memory_space<vmem>>, vector<1x1x8x4xbf16>,
    } else {
    }
    %c1_i32_81 = arith.constant 1 : i32
    %128 = arith.cmpi eq, %arg1, %c1_i32_81 : i32
    %129 = arith.extui %128 : i1 to i32
    %c0_i32_82 = arith.constant 0 : i32
    %130 = arith.cmpi ne, %129, %c0_i32_82 : i32
    scf.if %130 {
      %cst_154 = arith.constant 0.000000e+00 : bf16
      %232 = vector.broadcast %cst_154 : bf16 to vector<1x1x8x4xbf16>
      %c0_155 = arith.constant 0 : index
      %c5_156 = arith.constant 5 : index
      %c8_157 = arith.constant 8 : index
      %c0_158 = arith.constant 0 : index
      %233 = vector.load %arg16[%c0_155, %c5_156, %c8_157, %c0_158] : memref<1x8x24x4xbf16, #tpu.memory_space<vmem>>, vector<1x1x8x4xbf16>
      tpu.vector_store %arg16[%c0_155, %c5_156, %c8_157, %c0_158], %232 {strides = array<i32>} : memref<1x8x24x4xbf16, #tpu.memory_space<vmem>>, vector<1x1x8x4xbf16>,
    } else {
    }
    %c0_83 = arith.constant 0 : index
    %c0_84 = arith.constant 0 : index
    %c0_85 = arith.constant 0 : index
    %c0_86 = arith.constant 0 : index
    %131 = vector.load %arg16[%c0_83, %c0_84, %c0_85, %c0_86] : memref<1x8x24x4xbf16, #tpu.memory_space<vmem>>, vector<1x8x24x4xbf16>
    %cst_87 = arith.constant 0.000000e+00 : f32
    %132 = vector.broadcast %cst_87 : f32 to vector<32x4xf32>
    %133 = vector.extract_strided_slice %131 {offsets = [0, 0, 7, 0], sizes = [1, 4, 8, 4], strides = [1, 1, 1, 1]} : vector<1x8x24x4xbf16> to vector<1x4x8x4xbf16>
    %134 = vector.shape_cast %133 : vector<1x4x8x4xbf16> to vector<32x4xbf16>
    %c0_88 = arith.constant 0 : index
    %c0_89 = arith.constant 0 : index
    %c0_90 = arith.constant 0 : index
    %135 = vector.load %arg8[%c0_88, %c0_89, %c0_90] : memref<9x4x4xbf16, #tpu.memory_space<vmem>>, vector<1x4x4xbf16>
    %136 = vector.shape_cast %135 : vector<1x4x4xbf16> to vector<4x4xbf16>
    %cst_91 = arith.constant dense<0.000000e+00> : vector<32x4xf32>
    %137 = tpu.matmul %134, %136, %cst_91 {dimension_numbers = #tpu.dot_dimension_numbers<[1], [0], [0], [1], [0, 0, 1, 1], [], []>} : vector<32x4xbf16>, vector<4x4xbf16>, vector<32x4xf32> -> vector<32x4xf32>
    %138 = arith.addf %132, %137 : vector<32x4xf32>
    %139 = vector.extract_strided_slice %131 {offsets = [0, 0, 8, 0], sizes = [1, 4, 8, 4], strides = [1, 1, 1, 1]} : vector<1x8x24x4xbf16> to vector<1x4x8x4xbf16>
    %140 = vector.shape_cast %139 : vector<1x4x8x4xbf16> to vector<32x4xbf16>
    %c1_92 = arith.constant 1 : index
    %c0_93 = arith.constant 0 : index
    %c0_94 = arith.constant 0 : index
    %141 = vector.load %arg8[%c1_92, %c0_93, %c0_94] : memref<9x4x4xbf16, #tpu.memory_space<vmem>>, vector<1x4x4xbf16>
    %142 = vector.shape_cast %141 : vector<1x4x4xbf16> to vector<4x4xbf16>
    %cst_95 = arith.constant dense<0.000000e+00> : vector<32x4xf32>
    %143 = tpu.matmul %140, %142, %cst_95 {dimension_numbers = #tpu.dot_dimension_numbers<[1], [0], [0], [1], [0, 0, 1, 1], [], []>} : vector<32x4xbf16>, vector<4x4xbf16>, vector<32x4xf32> -> vector<32x4xf32>
    %144 = arith.addf %138, %143 : vector<32x4xf32>
    %145 = vector.extract_strided_slice %131 {offsets = [0, 0, 9, 0], sizes = [1, 4, 8, 4], strides = [1, 1, 1, 1]} : vector<1x8x24x4xbf16> to vector<1x4x8x4xbf16>
    %146 = vector.shape_cast %145 : vector<1x4x8x4xbf16> to vector<32x4xbf16>
    %c2_96 = arith.constant 2 : index
    %c0_97 = arith.constant 0 : index
    %c0_98 = arith.constant 0 : index
    %147 = vector.load %arg8[%c2_96, %c0_97, %c0_98] : memref<9x4x4xbf16, #tpu.memory_space<vmem>>, vector<1x4x4xbf16>
    %148 = vector.shape_cast %147 : vector<1x4x4xbf16> to vector<4x4xbf16>
    %cst_99 = arith.constant dense<0.000000e+00> : vector<32x4xf32>
    %149 = tpu.matmul %146, %148, %cst_99 {dimension_numbers = #tpu.dot_dimension_numbers<[1], [0], [0], [1], [0, 0, 1, 1], [], []>} : vector<32x4xbf16>, vector<4x4xbf16>, vector<32x4xf32> -> vector<32x4xf32>
    %150 = arith.addf %144, %149 : vector<32x4xf32>
    %151 = vector.extract_strided_slice %131 {offsets = [0, 1, 7, 0], sizes = [1, 4, 8, 4], strides = [1, 1, 1, 1]} : vector<1x8x24x4xbf16> to vector<1x4x8x4xbf16>
    %152 = vector.shape_cast %151 : vector<1x4x8x4xbf16> to vector<32x4xbf16>
    %c3_100 = arith.constant 3 : index
    %c0_101 = arith.constant 0 : index
    %c0_102 = arith.constant 0 : index
    %153 = vector.load %arg8[%c3_100, %c0_101, %c0_102] : memref<9x4x4xbf16, #tpu.memory_space<vmem>>, vector<1x4x4xbf16>
    %154 = vector.shape_cast %153 : vector<1x4x4xbf16> to vector<4x4xbf16>
    %cst_103 = arith.constant dense<0.000000e+00> : vector<32x4xf32>
    %155 = tpu.matmul %152, %154, %cst_103 {dimension_numbers = #tpu.dot_dimension_numbers<[1], [0], [0], [1], [0, 0, 1, 1], [], []>} : vector<32x4xbf16>, vector<4x4xbf16>, vector<32x4xf32> -> vector<32x4xf32>
    %156 = arith.addf %150, %155 : vector<32x4xf32>
    %157 = vector.extract_strided_slice %131 {offsets = [0, 1, 8, 0], sizes = [1, 4, 8, 4], strides = [1, 1, 1, 1]} : vector<1x8x24x4xbf16> to vector<1x4x8x4xbf16>
    %158 = vector.shape_cast %157 : vector<1x4x8x4xbf16> to vector<32x4xbf16>
    %c4_104 = arith.constant 4 : index
    %c0_105 = arith.constant 0 : index
    %c0_106 = arith.constant 0 : index
    %159 = vector.load %arg8[%c4_104, %c0_105, %c0_106] : memref<9x4x4xbf16, #tpu.memory_space<vmem>>, vector<1x4x4xbf16>
    %160 = vector.shape_cast %159 : vector<1x4x4xbf16> to vector<4x4xbf16>
    %cst_107 = arith.constant dense<0.000000e+00> : vector<32x4xf32>
    %161 = tpu.matmul %158, %160, %cst_107 {dimension_numbers = #tpu.dot_dimension_numbers<[1], [0], [0], [1], [0, 0, 1, 1], [], []>} : vector<32x4xbf16>, vector<4x4xbf16>, vector<32x4xf32> -> vector<32x4xf32>
    %162 = arith.addf %156, %161 : vector<32x4xf32>
    %163 = vector.extract_strided_slice %131 {offsets = [0, 1, 9, 0], sizes = [1, 4, 8, 4], strides = [1, 1, 1, 1]} : vector<1x8x24x4xbf16> to vector<1x4x8x4xbf16>
    %164 = vector.shape_cast %163 : vector<1x4x8x4xbf16> to vector<32x4xbf16>
    %c5_108 = arith.constant 5 : index
    %c0_109 = arith.constant 0 : index
    %c0_110 = arith.constant 0 : index
    %165 = vector.load %arg8[%c5_108, %c0_109, %c0_110] : memref<9x4x4xbf16, #tpu.memory_space<vmem>>, vector<1x4x4xbf16>
    %166 = vector.shape_cast %165 : vector<1x4x4xbf16> to vector<4x4xbf16>
    %cst_111 = arith.constant dense<0.000000e+00> : vector<32x4xf32>
    %167 = tpu.matmul %164, %166, %cst_111 {dimension_numbers = #tpu.dot_dimension_numbers<[1], [0], [0], [1], [0, 0, 1, 1], [], []>} : vector<32x4xbf16>, vector<4x4xbf16>, vector<32x4xf32> -> vector<32x4xf32>
    %168 = arith.addf %162, %167 : vector<32x4xf32>
    %169 = vector.extract_strided_slice %131 {offsets = [0, 2, 7, 0], sizes = [1, 4, 8, 4], strides = [1, 1, 1, 1]} : vector<1x8x24x4xbf16> to vector<1x4x8x4xbf16>
    %170 = vector.shape_cast %169 : vector<1x4x8x4xbf16> to vector<32x4xbf16>
    %c6_112 = arith.constant 6 : index
    %c0_113 = arith.constant 0 : index
    %c0_114 = arith.constant 0 : index
    %171 = vector.load %arg8[%c6_112, %c0_113, %c0_114] : memref<9x4x4xbf16, #tpu.memory_space<vmem>>, vector<1x4x4xbf16>
    %172 = vector.shape_cast %171 : vector<1x4x4xbf16> to vector<4x4xbf16>
    %cst_115 = arith.constant dense<0.000000e+00> : vector<32x4xf32>
    %173 = tpu.matmul %170, %172, %cst_115 {dimension_numbers = #tpu.dot_dimension_numbers<[1], [0], [0], [1], [0, 0, 1, 1], [], []>} : vector<32x4xbf16>, vector<4x4xbf16>, vector<32x4xf32> -> vector<32x4xf32>
    %174 = arith.addf %168, %173 : vector<32x4xf32>
    %175 = vector.extract_strided_slice %131 {offsets = [0, 2, 8, 0], sizes = [1, 4, 8, 4], strides = [1, 1, 1, 1]} : vector<1x8x24x4xbf16> to vector<1x4x8x4xbf16>
    %176 = vector.shape_cast %175 : vector<1x4x8x4xbf16> to vector<32x4xbf16>
    %c7_116 = arith.constant 7 : index
    %c0_117 = arith.constant 0 : index
    %c0_118 = arith.constant 0 : index
    %177 = vector.load %arg8[%c7_116, %c0_117, %c0_118] : memref<9x4x4xbf16, #tpu.memory_space<vmem>>, vector<1x4x4xbf16>
    %178 = vector.shape_cast %177 : vector<1x4x4xbf16> to vector<4x4xbf16>
    %cst_119 = arith.constant dense<0.000000e+00> : vector<32x4xf32>
    %179 = tpu.matmul %176, %178, %cst_119 {dimension_numbers = #tpu.dot_dimension_numbers<[1], [0], [0], [1], [0, 0, 1, 1], [], []>} : vector<32x4xbf16>, vector<4x4xbf16>, vector<32x4xf32> -> vector<32x4xf32>
    %180 = arith.addf %174, %179 : vector<32x4xf32>
    %181 = vector.extract_strided_slice %131 {offsets = [0, 2, 9, 0], sizes = [1, 4, 8, 4], strides = [1, 1, 1, 1]} : vector<1x8x24x4xbf16> to vector<1x4x8x4xbf16>
    %182 = vector.shape_cast %181 : vector<1x4x8x4xbf16> to vector<32x4xbf16>
    %c8_120 = arith.constant 8 : index
    %c0_121 = arith.constant 0 : index
    %c0_122 = arith.constant 0 : index
    %183 = vector.load %arg8[%c8_120, %c0_121, %c0_122] : memref<9x4x4xbf16, #tpu.memory_space<vmem>>, vector<1x4x4xbf16>
    %184 = vector.shape_cast %183 : vector<1x4x4xbf16> to vector<4x4xbf16>
    %cst_123 = arith.constant dense<0.000000e+00> : vector<32x4xf32>
    %185 = tpu.matmul %182, %184, %cst_123 {dimension_numbers = #tpu.dot_dimension_numbers<[1], [0], [0], [1], [0, 0, 1, 1], [], []>} : vector<32x4xbf16>, vector<4x4xbf16>, vector<32x4xf32> -> vector<32x4xf32>
    %186 = arith.addf %180, %185 : vector<32x4xf32>
    %c0_124 = arith.constant 0 : index
    %c0_125 = arith.constant 0 : index
    %187 = vector.load %arg9[%c0_124, %c0_125] : memref<1x4xf32, #tpu.memory_space<vmem>>, vector<1x4xf32>
    %188 = vector.broadcast %187 : vector<1x4xf32> to vector<32x4xf32>
    %189 = arith.addf %186, %188 : vector<32x4xf32>
    %190 = vector.shape_cast %189 : vector<32x4xf32> to vector<1x4x8x4xf32>
    %c0_126 = arith.constant 0 : index
    %c0_127 = arith.constant 0 : index
    %c0_128 = arith.constant 0 : index
    %c0_129 = arith.constant 0 : index
    %191 = vector.load %arg5[%c0_126, %c0_127, %c0_128, %c0_129] : memref<1x4x8x4xf32, #tpu.memory_space<vmem>>, vector<1x4x8x4xf32>
    %192 = vector.shape_cast %191 : vector<1x4x8x4xf32> to vector<32x4xf32>
    %193 = arith.truncf %192 : vector<32x4xf32> to vector<32x4xbf16>
    %194 = vector.shape_cast %17 : vector<1x4x8x4xf32> to vector<32x4xf32>
    %195 = arith.truncf %194 : vector<32x4xf32> to vector<32x4xbf16>
    %c0_130 = arith.constant 0 : index
    %c0_131 = arith.constant 0 : index
    %196 = vector.load %arg10[%c0_130, %c0_131] : memref<4x8xbf16, #tpu.memory_space<vmem>>, vector<4x8xbf16>
    %cst_132 = arith.constant dense<0.000000e+00> : vector<32x8xf32>
    %197 = tpu.matmul %193, %196, %cst_132 {dimension_numbers = #tpu.dot_dimension_numbers<[1], [0], [0], [1], [0, 0, 1, 1], [], []>} : vector<32x4xbf16>, vector<4x8xbf16>, vector<32x8xf32> -> vector<32x8xf32>
    %c0_133 = arith.constant 0 : index
    %c0_134 = arith.constant 0 : index
    %198 = vector.load %arg11[%c0_133, %c0_134] : memref<4x8xbf16, #tpu.memory_space<vmem>>, vector<4x8xbf16>
    %cst_135 = arith.constant dense<0.000000e+00> : vector<32x8xf32>
    %199 = tpu.matmul %195, %198, %cst_135 {dimension_numbers = #tpu.dot_dimension_numbers<[1], [0], [0], [1], [0, 0, 1, 1], [], []>} : vector<32x4xbf16>, vector<4x8xbf16>, vector<32x8xf32> -> vector<32x8xf32>
    %200 = arith.addf %197, %199 : vector<32x8xf32>
    %c0_136 = arith.constant 0 : index
    %c0_137 = arith.constant 0 : index
    %201 = vector.load %arg12[%c0_136, %c0_137] : memref<1x8xf32, #tpu.memory_space<vmem>>, vector<1x8xf32>
    %202 = vector.broadcast %201 : vector<1x8xf32> to vector<32x8xf32>
    %203 = arith.addf %200, %202 : vector<32x8xf32>
    %cst_138 = arith.constant 0.000000e+00 : f32
    %204 = vector.broadcast %cst_138 : f32 to vector<32x8xf32>
    %205 = arith.maximumf %203, %204 : vector<32x8xf32>
    %206 = arith.truncf %205 : vector<32x8xf32> to vector<32x8xbf16>
    %c0_139 = arith.constant 0 : index
    %c0_140 = arith.constant 0 : index
    %207 = vector.load %arg13[%c0_139, %c0_140] : memref<8x12xbf16, #tpu.memory_space<vmem>>, vector<8x12xbf16>
    %cst_141 = arith.constant dense<0.000000e+00> : vector<32x12xf32>
    %208 = tpu.matmul %206, %207, %cst_141 {dimension_numbers = #tpu.dot_dimension_numbers<[1], [0], [0], [1], [0, 0, 1, 1], [], []>} : vector<32x8xbf16>, vector<8x12xbf16>, vector<32x12xf32> -> vector<32x12xf32>
    %c0_142 = arith.constant 0 : index
    %c0_143 = arith.constant 0 : index
    %209 = vector.load %arg14[%c0_142, %c0_143] : memref<1x12xf32, #tpu.memory_space<vmem>>, vector<1x12xf32>
    %210 = vector.broadcast %209 : vector<1x12xf32> to vector<32x12xf32>
    %211 = arith.addf %208, %210 : vector<32x12xf32>
    %212 = vector.shape_cast %211 : vector<32x12xf32> to vector<1x4x8x12xf32>
    %213 = vector.extract_strided_slice %212 {offsets = [0, 0, 0, 0], sizes = [1, 4, 8, 4], strides = [1, 1, 1, 1]} : vector<1x4x8x12xf32> to vector<1x4x8x4xf32>
    %214 = vector.extract_strided_slice %212 {offsets = [0, 0, 0, 4], sizes = [1, 4, 8, 4], strides = [1, 1, 1, 1]} : vector<1x4x8x12xf32> to vector<1x4x8x4xf32>
    %215 = vector.extract_strided_slice %212 {offsets = [0, 0, 0, 8], sizes = [1, 4, 8, 4], strides = [1, 1, 1, 1]} : vector<1x4x8x12xf32> to vector<1x4x8x4xf32>
    %216 = arith.addf %190, %214 : vector<1x4x8x4xf32>
    %217 = arith.addf %213, %215 : vector<1x4x8x4xf32>
    %218 = arith.subf %190, %214 : vector<1x4x8x4xf32>
    %219 = arith.subf %213, %215 : vector<1x4x8x4xf32>
    %220 = arith.addf %216, %217 : vector<1x4x8x4xf32>
    %221 = arith.subf %216, %217 : vector<1x4x8x4xf32>
    %222 = tpu.concatenate %220, %221 in 3 : vector<1x4x8x4xf32>, vector<1x4x8x4xf32> -> vector<1x4x8x8xf32>
    %c0_144 = arith.constant 0 : index
    %c0_145 = arith.constant 0 : index
    %c0_146 = arith.constant 0 : index
    %c0_147 = arith.constant 0 : index
    %c0_148 = arith.constant 0 : index
    %223 = vector.load %arg15[%c0_144, %c0_145, %c0_146, %c0_147, %c0_148] : memref<1x4x2x8x8xf32, #tpu.memory_space<vmem>>, vector<1x4x1x8x8xf32>
    %224 = vector.shape_cast %223 : vector<1x4x1x8x8xf32> to vector<1x4x8x8xf32>
    %225 = vector.shape_cast %222 : vector<1x4x8x8xf32> to vector<1x4x1x8x8xf32>
    tpu.vector_store %arg15[%c0_144, %c0_145, %c0_146, %c0_147, %c0_148], %225 {strides = array<i32>} : memref<1x4x2x8x8xf32, #tpu.memory_space<vmem>>, vector<1x4x1x8x8xf32>,
    %226 = arith.addf %218, %219 : vector<1x4x8x4xf32>
    %227 = arith.subf %218, %219 : vector<1x4x8x4xf32>
    %228 = tpu.concatenate %226, %227 in 3 : vector<1x4x8x4xf32>, vector<1x4x8x4xf32> -> vector<1x4x8x8xf32>
    %c0_149 = arith.constant 0 : index
    %c0_150 = arith.constant 0 : index
    %c1_151 = arith.constant 1 : index
    %c0_152 = arith.constant 0 : index
    %c0_153 = arith.constant 0 : index
    %229 = vector.load %arg15[%c0_149, %c0_150, %c1_151, %c0_152, %c0_153] : memref<1x4x2x8x8xf32, #tpu.memory_space<vmem>>, vector<1x4x1x8x8xf32>
    %230 = vector.shape_cast %229 : vector<1x4x1x8x8xf32> to vector<1x4x8x8xf32>
    %231 = vector.shape_cast %228 : vector<1x4x8x8xf32> to vector<1x4x1x8x8xf32>
    tpu.vector_store %arg15[%c0_149, %c0_150, %c1_151, %c0_152, %c0_153], %231 {strides = array<i32>} : memref<1x4x2x8x8xf32, #tpu.memory_space<vmem>>, vector<1x4x1x8x8xf32>,
    return
  }
  func.func @transform_0(%arg0: i32, %arg1: i32) -> (i32, i32, i32, i32, i32) {
    %c0_i32 = arith.constant 0 : i32
    %c0_i32_0 = arith.constant 0 : i32
    %c0_i32_1 = arith.constant 0 : i32
    %c0_i32_2 = arith.constant 0 : i32
    return %arg0, %arg1, %c0_i32, %c0_i32_0, %c0_i32_1 : i32, i32, i32, i32, i32
  }
  func.func @transform_1(%arg0: i32, %arg1: i32) -> (i32, i32, i32, i32, i32) {
    %c2_i32 = arith.constant 2 : i32
    %0 = arith.muli %arg1, %c2_i32 : i32
    %c1_i32 = arith.constant 1 : i32
    %1 = arith.subi %0, %c1_i32 : i32
    %c0_i32 = arith.constant 0 : i32
    %2 = arith.maxsi %1, %c0_i32 : i32
    %c0_i32_0 = arith.constant 0 : i32
    %c0_i32_1 = arith.constant 0 : i32
    %c0_i32_2 = arith.constant 0 : i32
    %c0_i32_3 = arith.constant 0 : i32
    return %arg0, %2, %c0_i32_0, %c0_i32_1, %c0_i32_2 : i32, i32, i32, i32, i32
  }
  func.func @transform_2(%arg0: i32, %arg1: i32) -> (i32, i32, i32, i32, i32) {
    %c1_i32 = arith.constant 1 : i32
    %0 = arith.addi %arg1, %c1_i32 : i32
    %c2_i32 = arith.constant 2 : i32
    %1 = arith.muli %0, %c2_i32 : i32
    %c3_i32 = arith.constant 3 : i32
    %2 = arith.minsi %1, %c3_i32 : i32
    %c0_i32 = arith.constant 0 : i32
    %c0_i32_0 = arith.constant 0 : i32
    %c0_i32_1 = arith.constant 0 : i32
    %c0_i32_2 = arith.constant 0 : i32
    return %arg0, %2, %c0_i32, %c0_i32_0, %c0_i32_1 : i32, i32, i32, i32, i32
  }
  func.func @transform_3(%arg0: i32, %arg1: i32) -> (i32, i32, i32, i32) {
    %c0_i32 = arith.constant 0 : i32
    %c0_i32_0 = arith.constant 0 : i32
    %c0_i32_1 = arith.constant 0 : i32
    return %arg0, %arg1, %c0_i32, %c0_i32_0 : i32, i32, i32, i32
  }
  func.func @transform_4(%arg0: i32, %arg1: i32) -> (i32, i32, i32) {
    %c0_i32 = arith.constant 0 : i32
    %c0_i32_0 = arith.constant 0 : i32
    %c0_i32_1 = arith.constant 0 : i32
    %c0_i32_2 = arith.constant 0 : i32
    return %c0_i32, %c0_i32_0, %c0_i32_1 : i32, i32, i32
  }
  func.func @transform_5(%arg0: i32, %arg1: i32) -> (i32, i32) {
    %c0_i32 = arith.constant 0 : i32
    %c0_i32_0 = arith.constant 0 : i32
    %c0_i32_1 = arith.constant 0 : i32
    return %c0_i32, %c0_i32_0 : i32, i32
  }
  func.func @transform_6(%arg0: i32, %arg1: i32) -> (i32, i32, i32) {
    %c0_i32 = arith.constant 0 : i32
    %c0_i32_0 = arith.constant 0 : i32
    %c0_i32_1 = arith.constant 0 : i32
    %c0_i32_2 = arith.constant 0 : i32
    return %c0_i32, %c0_i32_0, %c0_i32_1 : i32, i32, i32
  }
  func.func @transform_7(%arg0: i32, %arg1: i32) -> (i32, i32) {
    %c0_i32 = arith.constant 0 : i32
    %c0_i32_0 = arith.constant 0 : i32
    %c0_i32_1 = arith.constant 0 : i32
    return %c0_i32, %c0_i32_0 : i32, i32
  }
  func.func @transform_8(%arg0: i32, %arg1: i32) -> (i32, i32) {
    %c0_i32 = arith.constant 0 : i32
    %c0_i32_0 = arith.constant 0 : i32
    %c0_i32_1 = arith.constant 0 : i32
    return %c0_i32, %c0_i32_0 : i32, i32
  }
  func.func @transform_9(%arg0: i32, %arg1: i32) -> (i32, i32) {
    %c0_i32 = arith.constant 0 : i32
    %c0_i32_0 = arith.constant 0 : i32
    %c0_i32_1 = arith.constant 0 : i32
    return %c0_i32, %c0_i32_0 : i32, i32
  }
  func.func @transform_10(%arg0: i32, %arg1: i32) -> (i32, i32) {
    %c0_i32 = arith.constant 0 : i32
    %c0_i32_0 = arith.constant 0 : i32
    %c0_i32_1 = arith.constant 0 : i32
    return %c0_i32, %c0_i32_0 : i32, i32
  }
  func.func @transform_11(%arg0: i32, %arg1: i32) -> (i32, i32) {
    %c0_i32 = arith.constant 0 : i32
    %c0_i32_0 = arith.constant 0 : i32
    %c0_i32_1 = arith.constant 0 : i32
    return %c0_i32, %c0_i32_0 : i32, i32
  }
  func.func @transform_12(%arg0: i32, %arg1: i32) -> (i32, i32) {
    %c0_i32 = arith.constant 0 : i32
    %c0_i32_0 = arith.constant 0 : i32
    %c0_i32_1 = arith.constant 0 : i32
    return %c0_i32, %c0_i32_0 : i32, i32
  }
  func.func @transform_13(%arg0: i32, %arg1: i32) -> (i32, i32, i32, i32, i32) {
    %c0_i32 = arith.constant 0 : i32
    %c0_i32_0 = arith.constant 0 : i32
    %c0_i32_1 = arith.constant 0 : i32
    %c0_i32_2 = arith.constant 0 : i32
    return %arg0, %arg1, %c0_i32, %c0_i32_0, %c0_i32_1 : i32, i32, i32, i32, i32
  }
}

</mosaic_0001>

<llo_original>
// kernel: wfu_forward.1
$region0: #{wfu_forward.1}
  #allocation0 [shape = 'u32[]', space=smem, size = 0x4, offset = 0x4, fixed_abs, tag = 'smem constant byte address 0x4 - core index']
  #allocation1 [shape = 'u32[72,128]{1,0:T(1,128)}', space=vmem, size = 0x9000, scoped, tag = 'internal scratch']
  #allocation2 [shape = 'bf16[1,8,24,4]{3,2,1,0:T(8,128)(2,1)}', space=vmem, size = 0xc000, scoped, tag = 'scratch operand']
  %s0 = inlined_call_operand.vmem [shape: f32[2,8,2,8,8], index: 0, kind: input, shape index: {}, may-alias: {0,1,2}]
  %s1 = inlined_call_operand.vmem [shape: f32[2,8,2,8,8], index: 1, kind: input, shape index: {}, may-alias: {0,1,2}]
  %s2 = inlined_call_operand.vmem [shape: f32[2,8,2,8,8], index: 2, kind: input, shape index: {}, may-alias: {0,1,2}]
  %s3 = inlined_call_operand.vmem [shape: f32[2,8,8,4], index: 3, kind: input, shape index: {}]
  %s4 = inlined_call_operand.vmem [shape: bf16[9,4,4], index: 4, kind: input, shape index: {}]
  %s5 = inlined_call_operand.vmem [shape: f32[1,4], index: 5, kind: input, shape index: {}]
  %s6 = inlined_call_operand.vmem [shape: bf16[9,4,4], index: 6, kind: input, shape index: {}]
  %s7 = inlined_call_operand.vmem [shape: f32[1,4], index: 7, kind: input, shape index: {}]
  %s8 = inlined_call_operand.vmem [shape: bf16[4,8], index: 8, kind: input, shape index: {}]
  %s9 = inlined_call_operand.vmem [shape: bf16[4,8], index: 9, kind: input, shape index: {}]
  %s10 = inlined_call_operand.vmem [shape: f32[1,8], index: 10, kind: input, shape index: {}]
  %s11 = inlined_call_operand.vmem [shape: bf16[8,12], index: 11, kind: input, shape index: {}]
  %s12 = inlined_call_operand.vmem [shape: f32[1,12], index: 12, kind: input, shape index: {}]
  %s13 = inlined_call_operand.vmem [shape: f32[2,8,2,8,8], index: 13, kind: output, shape index: {}]
  %s14 = sld [smem:[#allocation0]]
  $region93: #{wfu_forward.1} parent=0
    _
  %s16 = ssub.s32 1, %s14
  %s17 = scalar_select 0, %s16, %s14
  loop: start=0, step=1, limit=6
  $region2: #{wfu_forward.1} parent=0 // loop_pre_header
    _
  $region3: #{wfu_forward.1} parent=0 // loop_header
    %s19 = sphi 0, %s23
    %p20 = scmp.ge.s32.totalorder %s19, 6
    %s26 = sphi 0, %s38
    %s27 = sphi 0, %s34
    %s28 = sphi 0, %s26
    %s29 = sphi 0, %s27
    %s30 = sphi 0, %s28
    %s31 = sphi 0, %s29
    %s43 = sphi 0, %s45
    %s46 = sphi 0, %s43
    %s47 = sphi 0, %s46
    %s63 = sphi 0, %s47
    %s79 = sphi 0, %s81
    %s82 = sphi 0, %s79
    %s83 = sphi 0, %s82
    %s99 = sphi 0, %s83
    %s115 = sphi 0, %s117
    %s118 = sphi 0, %s115
    %s119 = sphi 0, %s118
    %s135 = sphi 0, %s119
    %s143 = sphi 0, %s145
    %s146 = sphi 0, %s143
    %s147 = sphi 0, %s146
    %s163 = sphi 0, %s147
    %s167 = sphi 0, %s167
    %s169 = sphi 0, %s167
    %s170 = sphi 0, %s169
    %s184 = sphi 0, %s170
    %s188 = sphi 0, %s188
    %s190 = sphi 0, %s188
    %s191 = sphi 0, %s190
    %s205 = sphi 0, %s191
    %s209 = sphi 0, %s209
    %s211 = sphi 0, %s209
    %s212 = sphi 0, %s211
    %s226 = sphi 0, %s212
    %s230 = sphi 0, %s230
    %s232 = sphi 0, %s230
    %s233 = sphi 0, %s232
    %s247 = sphi 0, %s233
    %s251 = sphi 0, %s251
    %s253 = sphi 0, %s251
    %s254 = sphi 0, %s253
    %s268 = sphi 0, %s254
    %s272 = sphi 0, %s272
    %s274 = sphi 0, %s272
    %s275 = sphi 0, %s274
    %s289 = sphi 0, %s275
    %s293 = sphi 0, %s293
    %s295 = sphi 0, %s293
    %s296 = sphi 0, %s295
    %s310 = sphi 0, %s296
    %s314 = sphi 0, %s314
    %s316 = sphi 0, %s314
    %s317 = sphi 0, %s316
    %s331 = sphi 0, %s317
    %s335 = sphi 0, %s335
    %s337 = sphi 0, %s335
    %s338 = sphi 0, %s337
    %s352 = sphi 0, %s338
    %s360 = sphi 0, %s362
    %s363 = sphi 0, %s360
    %s364 = sphi 0, %s363
    %s380 = sphi 0, %s364
  $region4: #{wfu_forward.1} parent=0 // loop_header_branch
    %22 = sbr.rel (%p20) target = $region8
  $region5: #{wfu_forward.1} parent=0 // loop_body
    %s24 = ssub.s32 %s19, 1
    %s25 = ssub.s32 %s19, 2
    %s32 = sadd.s32 1, %s27
    %p33 = scmp.ge.s32.totalorder %s32, 2
    %s34 = scalar_select %p33, 0, %s32
    %s35 = sadd.s32 1, %s26
    %s36 = scalar_select %p33, %s35, %s26
    %p37 = scmp.ge.s32.totalorder %s36, 2
    %s38 = scalar_select %p37, 0, %s36
    %s39 = ssub.s32 %s26, %s38
    %s40 = ssub.s32 %s27, %s34
    %s41 = sor.u32 %s39, %s40
    %p42 = scmp.eq.s32.totalorder %s41, 0
    %s44 = sadd.s32 %s43, 1
    %s45 = scalar_select %p42, %s43, %s44
    %p48 = pneg %p42
    %p49 = scmp.eq.s32.totalorder %s19, 3
    %p50 = por %p48, %p49
    %p51 = scmp.ne.s32.totalorder %s43, %s46
    %p52 = scmp.eq.s32.totalorder %s19, 0
    %p53 = por %p51, %p52
    %p54 = scmp.ne.s32.totalorder %s43, %s46
    %p55 = scmp.eq.s32.totalorder %s24, 3
    %p56 = por %p54, %p55
    %p57 = scmp.ne.s32.totalorder %s46, %s47
    %p58 = scmp.eq.s32.totalorder %s24, 0
    %p59 = por %p57, %p58
    %p60 = scmp.ne.s32.totalorder %s46, %s47
    %p61 = scmp.eq.s32.totalorder %s25, 3
    %p62 = por %p60, %p61
    %p64 = scmp.ne.s32.totalorder %s47, %s63
    %p65 = scmp.eq.s32.totalorder %s25, 0
    %p66 = por %p64, %p65
    %s67 = smul.u32 %s27, 2
    %s68 = ssub.s32 %s67, 1
    %p69 = scmp.gt.s32.totalorder %s68, 0
    %s70 = scalar_select %p69, %s68, 0
    %s71 = smul.u32 %s34, 2
    %s72 = ssub.s32 %s71, 1
    %p73 = scmp.gt.s32.totalorder %s72, 0
    %s74 = scalar_select %p73, %s72, 0
    %s75 = ssub.s32 %s26, %s38
    %s76 = ssub.s32 %s70, %s74
    %s77 = sor.u32 %s75, %s76
    %p78 = scmp.eq.s32.totalorder %s77, 0
    %s80 = sadd.s32 %s79, 1
    %s81 = scalar_select %p78, %s79, %s80
    %p84 = pneg %p78
    %p85 = scmp.eq.s32.totalorder %s19, 3
    %p86 = por %p84, %p85
    %p87 = scmp.ne.s32.totalorder %s79, %s82
    %p88 = scmp.eq.s32.totalorder %s19, 0
    %p89 = por %p87, %p88
    %p90 = scmp.ne.s32.totalorder %s79, %s82
    %p91 = scmp.eq.s32.totalorder %s24, 3
    %p92 = por %p90, %p91
    %p93 = scmp.ne.s32.totalorder %s82, %s83
    %p94 = scmp.eq.s32.totalorder %s24, 0
    %p95 = por %p93, %p94
    %p96 = scmp.ne.s32.totalorder %s82, %s83
    %p97 = scmp.eq.s32.totalorder %s25, 3
    %p98 = por %p96, %p97
    %p100 = scmp.ne.s32.totalorder %s83, %s99
    %p101 = scmp.eq.s32.totalorder %s25, 0
    %p102 = por %p100, %p101
    %s103 = sadd.s32 %s27, 1
    %s104 = smul.u32 %s103, 2
    %p105 = scmp.lt.s32.totalorder %s104, 3
    %s106 = scalar_select %p105, %s104, 3
    %s107 = sadd.s32 %s34, 1
    %s108 = smul.u32 %s107, 2
    %p109 = scmp.lt.s32.totalorder %s108, 3
    %s110 = scalar_select %p109, %s108, 3
    %s111 = ssub.s32 %s26, %s38
    %s112 = ssub.s32 %s106, %s110
    %s113 = sor.u32 %s111, %s112
    %p114 = scmp.eq.s32.totalorder %s113, 0
    %s116 = sadd.s32 %s115, 1
    %s117 = scalar_select %p114, %s115, %s116
    %p120 = pneg %p114
    %p121 = scmp.eq.s32.totalorder %s19, 3
    %p122 = por %p120, %p121
    %p123 = scmp.ne.s32.totalorder %s115, %s118
    %p124 = scmp.eq.s32.totalorder %s19, 0
    %p125 = por %p123, %p124
    %p126 = scmp.ne.s32.totalorder %s115, %s118
    %p127 = scmp.eq.s32.totalorder %s24, 3
    %p128 = por %p126, %p127
    %p129 = scmp.ne.s32.totalorder %s118, %s119
    %p130 = scmp.eq.s32.totalorder %s24, 0
    %p131 = por %p129, %p130
    %p132 = scmp.ne.s32.totalorder %s118, %s119
    %p133 = scmp.eq.s32.totalorder %s25, 3
    %p134 = por %p132, %p133
    %p136 = scmp.ne.s32.totalorder %s119, %s135
    %p137 = scmp.eq.s32.totalorder %s25, 0
    %p138 = por %p136, %p137
    %s139 = ssub.s32 %s26, %s38
    %s140 = ssub.s32 %s27, %s34
    %s141 = sor.u32 %s139, %s140
    %p142 = scmp.eq.s32.totalorder %s141, 0
    %s144 = sadd.s32 %s143, 1
    %s145 = scalar_select %p142, %s143, %s144
    %p148 = pneg %p142
    %p149 = scmp.eq.s32.totalorder %s19, 3
    %p150 = por %p148, %p149
    %p151 = scmp.ne.s32.totalorder %s143, %s146
    %p152 = scmp.eq.s32.totalorder %s19, 0
    %p153 = por %p151, %p152
    %p154 = scmp.ne.s32.totalorder %s143, %s146
    %p155 = scmp.eq.s32.totalorder %s24, 3
    %p156 = por %p154, %p155
    %p157 = scmp.ne.s32.totalorder %s146, %s147
    %p158 = scmp.eq.s32.totalorder %s24, 0
    %p159 = por %p157, %p158
    %p160 = scmp.ne.s32.totalorder %s146, %s147
    %p161 = scmp.eq.s32.totalorder %s25, 3
    %p162 = por %p160, %p161
    %p164 = scmp.ne.s32.totalorder %s147, %s163
    %p165 = scmp.eq.s32.totalorder %s25, 0
    %p166 = por %p164, %p165
    %s168 = sadd.s32 %s167, 1
    %p171 = scmp.eq.s32.totalorder %s19, 3
    %p172 = scmp.ne.s32.totalorder %s167, %s169
    %p173 = scmp.eq.s32.totalorder %s19, 0
    %p174 = por %p172, %p173
    %p175 = scmp.ne.s32.totalorder %s167, %s169
    %p176 = scmp.eq.s32.totalorder %s24, 3
    %p177 = por %p175, %p176
    %p178 = scmp.ne.s32.totalorder %s169, %s170
    %p179 = scmp.eq.s32.totalorder %s24, 0
    %p180 = por %p178, %p179
    %p181 = scmp.ne.s32.totalorder %s169, %s170
    %p182 = scmp.eq.s32.totalorder %s25, 3
    %p183 = por %p181, %p182
    %p185 = scmp.ne.s32.totalorder %s170, %s184
    %p186 = scmp.eq.s32.totalorder %s25, 0
    %p187 = por %p185, %p186
    %s189 = sadd.s32 %s188, 1
    %p192 = scmp.eq.s32.totalorder %s19, 3
    %p193 = scmp.ne.s32.totalorder %s188, %s190
    %p194 = scmp.eq.s32.totalorder %s19, 0
    %p195 = por %p193, %p194
    %p196 = scmp.ne.s32.totalorder %s188, %s190
    %p197 = scmp.eq.s32.totalorder %s24, 3
    %p198 = por %p196, %p197
    %p199 = scmp.ne.s32.totalorder %s190, %s191
    %p200 = scmp.eq.s32.totalorder %s24, 0
    %p201 = por %p199, %p200
    %p202 = scmp.ne.s32.totalorder %s190, %s191
    %p203 = scmp.eq.s32.totalorder %s25, 3
    %p204 = por %p202, %p203
    %p206 = scmp.ne.s32.totalorder %s191, %s205
    %p207 = scmp.eq.s32.totalorder %s25, 0
    %p208 = por %p206, %p207
    %s210 = sadd.s32 %s209, 1
    %p213 = scmp.eq.s32.totalorder %s19, 3
    %p214 = scmp.ne.s32.totalorder %s209, %s211
    %p215 = scmp.eq.s32.totalorder %s19, 0
    %p216 = por %p214, %p215
    %p217 = scmp.ne.s32.totalorder %s209, %s211
    %p218 = scmp.eq.s32.totalorder %s24, 3
    %p219 = por %p217, %p218
    %p220 = scmp.ne.s32.totalorder %s211, %s212
    %p221 = scmp.eq.s32.totalorder %s24, 0
    %p222 = por %p220, %p221
    %p223 = scmp.ne.s32.totalorder %s211, %s212
    %p224 = scmp.eq.s32.totalorder %s25, 3
    %p225 = por %p223, %p224
    %p227 = scmp.ne.s32.totalorder %s212, %s226
    %p228 = scmp.eq.s32.totalorder %s25, 0
    %p229 = por %p227, %p228
    %s231 = sadd.s32 %s230, 1
    %p234 = scmp.eq.s32.totalorder %s19, 3
    %p235 = scmp.ne.s32.totalorder %s230, %s232
    %p236 = scmp.eq.s32.totalorder %s19, 0
    %p237 = por %p235, %p236
    %p238 = scmp.ne.s32.totalorder %s230, %s232
    %p239 = scmp.eq.s32.totalorder %s24, 3
    %p240 = por %p238, %p239
    %p241 = scmp.ne.s32.totalorder %s232, %s233
    %p242 = scmp.eq.s32.totalorder %s24, 0
    %p243 = por %p241, %p242
    %p244 = scmp.ne.s32.totalorder %s232, %s233
    %p245 = scmp.eq.s32.totalorder %s25, 3
    %p246 = por %p244, %p245
    %p248 = scmp.ne.s32.totalorder %s233, %s247
    %p249 = scmp.eq.s32.totalorder %s25, 0
    %p250 = por %p248, %p249
    %s252 = sadd.s32 %s251, 1
    %p255 = scmp.eq.s32.totalorder %s19, 3
    %p256 = scmp.ne.s32.totalorder %s251, %s253
    %p257 = scmp.eq.s32.totalorder %s19, 0
    %p258 = por %p256, %p257
    %p259 = scmp.ne.s32.totalorder %s251, %s253
    %p260 = scmp.eq.s32.totalorder %s24, 3
    %p261 = por %p259, %p260
    %p262 = scmp.ne.s32.totalorder %s253, %s254
    %p263 = scmp.eq.s32.totalorder %s24, 0
    %p264 = por %p262, %p263
    %p265 = scmp.ne.s32.totalorder %s253, %s254
    %p266 = scmp.eq.s32.totalorder %s25, 3
    %p267 = por %p265, %p266
    %p269 = scmp.ne.s32.totalorder %s254, %s268
    %p270 = scmp.eq.s32.totalorder %s25, 0
    %p271 = por %p269, %p270
    %s273 = sadd.s32 %s272, 1
    %p276 = scmp.eq.s32.totalorder %s19, 3
    %p277 = scmp.ne.s32.totalorder %s272, %s274
    %p278 = scmp.eq.s32.totalorder %s19, 0
    %p279 = por %p277, %p278
    %p280 = scmp.ne.s32.totalorder %s272, %s274
    %p281 = scmp.eq.s32.totalorder %s24, 3
    %p282 = por %p280, %p281
    %p283 = scmp.ne.s32.totalorder %s274, %s275
    %p284 = scmp.eq.s32.totalorder %s24, 0
    %p285 = por %p283, %p284
    %p286 = scmp.ne.s32.totalorder %s274, %s275
    %p287 = scmp.eq.s32.totalorder %s25, 3
    %p288 = por %p286, %p287
    %p290 = scmp.ne.s32.totalorder %s275, %s289
    %p291 = scmp.eq.s32.totalorder %s25, 0
    %p292 = por %p290, %p291
    %s294 = sadd.s32 %s293, 1
    %p297 = scmp.eq.s32.totalorder %s19, 3
    %p298 = scmp.ne.s32.totalorder %s293, %s295
    %p299 = scmp.eq.s32.totalorder %s19, 0
    %p300 = por %p298, %p299
    %p301 = scmp.ne.s32.totalorder %s293, %s295
    %p302 = scmp.eq.s32.totalorder %s24, 3
    %p303 = por %p301, %p302
    %p304 = scmp.ne.s32.totalorder %s295, %s296
    %p305 = scmp.eq.s32.totalorder %s24, 0
    %p306 = por %p304, %p305
    %p307 = scmp.ne.s32.totalorder %s295, %s296
    %p308 = scmp.eq.s32.totalorder %s25, 3
    %p309 = por %p307, %p308
    %p311 = scmp.ne.s32.totalorder %s296, %s310
    %p312 = scmp.eq.s32.totalorder %s25, 0
    %p313 = por %p311, %p312
    %s315 = sadd.s32 %s314, 1
    %p318 = scmp.eq.s32.totalorder %s19, 3
    %p319 = scmp.ne.s32.totalorder %s314, %s316
    %p320 = scmp.eq.s32.totalorder %s19, 0
    %p321 = por %p319, %p320
    %p322 = scmp.ne.s32.totalorder %s314, %s316
    %p323 = scmp.eq.s32.totalorder %s24, 3
    %p324 = por %p322, %p323
    %p325 = scmp.ne.s32.totalorder %s316, %s317
    %p326 = scmp.eq.s32.totalorder %s24, 0
    %p327 = por %p325, %p326
    %p328 = scmp.ne.s32.totalorder %s316, %s317
    %p329 = scmp.eq.s32.totalorder %s25, 3
    %p330 = por %p328, %p329
    %p332 = scmp.ne.s32.totalorder %s317, %s331
    %p333 = scmp.eq.s32.totalorder %s25, 0
    %p334 = por %p332, %p333
    %s336 = sadd.s32 %s335, 1
    %p339 = scmp.eq.s32.totalorder %s19, 3
    %p340 = scmp.ne.s32.totalorder %s335, %s337
    %p341 = scmp.eq.s32.totalorder %s19, 0
    %p342 = por %p340, %p341
    %p343 = scmp.ne.s32.totalorder %s335, %s337
    %p344 = scmp.eq.s32.totalorder %s24, 3
    %p345 = por %p343, %p344
    %p346 = scmp.ne.s32.totalorder %s337, %s338
    %p347 = scmp.eq.s32.totalorder %s24, 0
    %p348 = por %p346, %p347
    %p349 = scmp.ne.s32.totalorder %s337, %s338
    %p350 = scmp.eq.s32.totalorder %s25, 3
    %p351 = por %p349, %p350
    %p353 = scmp.ne.s32.totalorder %s338, %s352
    %p354 = scmp.eq.s32.totalorder %s25, 0
    %p355 = por %p353, %p354
    %s356 = ssub.s32 %s26, %s38
    %s357 = ssub.s32 %s27, %s34
    %s358 = sor.u32 %s356, %s357
    %p359 = scmp.eq.s32.totalorder %s358, 0
    %s361 = sadd.s32 %s360, 1
    %s362 = scalar_select %p359, %s360, %s361
    %p365 = pneg %p359
    %p366 = scmp.eq.s32.totalorder %s19, 3
    %p367 = por %p365, %p366
    %p368 = scmp.ne.s32.totalorder %s360, %s363
    %p369 = scmp.eq.s32.totalorder %s19, 0
    %p370 = por %p368, %p369
    %p371 = scmp.ne.s32.totalorder %s360, %s363
    %p372 = scmp.eq.s32.totalorder %s24, 3
    %p373 = por %p371, %p372
    %p374 = scmp.ne.s32.totalorder %s363, %s364
    %p375 = scmp.eq.s32.totalorder %s24, 0
    %p376 = por %p374, %p375
    %p377 = scmp.ne.s32.totalorder %s363, %s364
    %p378 = scmp.eq.s32.totalorder %s25, 3
    %p379 = por %p377, %p378
    %p381 = scmp.ne.s32.totalorder %s364, %s380
    %p382 = scmp.eq.s32.totalorder %s25, 0
    %p383 = por %p381, %p382
    %p384 = scmp.le.s32.totalorder 1, %s19
    %p385 = scmp.lt.s32.totalorder %s19, 5
    %p386 = pnand %p384, %p385
    %p387 = pneg %p386
    // Predicated region
    $region9: #{wfu_forward.1} parent=5 // pred_check
      _
    $region10: #{wfu_forward.1} parent=5 // pred_check_branch
      %389 = sbr.rel (%p386) target = $region12
    $region11: #{wfu_forward.1} parent=5 // pred_region
      %s390 = ssub.s32 %s19, 1
      // Predicated region
      $region13: #{wfu_forward.1} parent=11 // pred_check
        %p391 = pneg %p180
      $region14: #{wfu_forward.1} parent=11 // pred_check_branch
        %393 = sbr.rel (%p391) target = $region16
      $region15: #{wfu_forward.1} parent=11 // pred_region
        _
      $region16: #{wfu_forward.1} parent=11 // pred_fallthru
        _
      // Predicated region
      $region17: #{wfu_forward.1} parent=11 // pred_check
        %p394 = pneg %p201
      $region18: #{wfu_forward.1} parent=11 // pred_check_branch
        %396 = sbr.rel (%p394) target = $region20
      $region19: #{wfu_forward.1} parent=11 // pred_region
        _
      $region20: #{wfu_forward.1} parent=11 // pred_fallthru
        _
      // Predicated region
      $region21: #{wfu_forward.1} parent=11 // pred_check
        %p397 = pneg %p222
      $region22: #{wfu_forward.1} parent=11 // pred_check_branch
        %399 = sbr.rel (%p397) target = $region24
      $region23: #{wfu_forward.1} parent=11 // pred_region
        _
      $region24: #{wfu_forward.1} parent=11 // pred_fallthru
        _
      // Predicated region
      $region25: #{wfu_forward.1} parent=11 // pred_check
        %p400 = pneg %p243
      $region26: #{wfu_forward.1} parent=11 // pred_check_branch
        %402 = sbr.rel (%p400) target = $region28
      $region27: #{wfu_forward.1} parent=11 // pred_region
        _
      $region28: #{wfu_forward.1} parent=11 // pred_fallthru
        _
      // Predicated region
      $region29: #{wfu_forward.1} parent=11 // pred_check
        %p403 = pneg %p264
      $region30: #{wfu_forward.1} parent=11 // pred_check_branch
        %405 = sbr.rel (%p403) target = $region32
      $region31: #{wfu_forward.1} parent=11 // pred_region
        _
      $region32: #{wfu_forward.1} parent=11 // pred_fallthru
        _
      // Predicated region
      $region33: #{wfu_forward.1} parent=11 // pred_check
        %p406 = pneg %p285
      $region34: #{wfu_forward.1} parent=11 // pred_check_branch
        %408 = sbr.rel (%p406) target = $region36
      $region35: #{wfu_forward.1} parent=11 // pred_region
        _
      $region36: #{wfu_forward.1} parent=11 // pred_fallthru
        _
      // Predicated region
      $region37: #{wfu_forward.1} parent=11 // pred_check
        %p409 = pneg %p306
      $region38: #{wfu_forward.1} parent=11 // pred_check_branch
        %411 = sbr.rel (%p409) target = $region40
      $region39: #{wfu_forward.1} parent=11 // pred_region
        _
      $region40: #{wfu_forward.1} parent=11 // pred_fallthru
        _
      // Predicated region
      $region41: #{wfu_forward.1} parent=11 // pred_check
        %p412 = pneg %p327
      $region42: #{wfu_forward.1} parent=11 // pred_check_branch
        %414 = sbr.rel (%p412) target = $region44
      $region43: #{wfu_forward.1} parent=11 // pred_region
        _
      $region44: #{wfu_forward.1} parent=11 // pred_fallthru
        _
      // Predicated region
      $region45: #{wfu_forward.1} parent=11 // pred_check
        %p415 = pneg %p348
      $region46: #{wfu_forward.1} parent=11 // pred_check_branch
        %417 = sbr.rel (%p415) target = $region48
      $region47: #{wfu_forward.1} parent=11 // pred_region
        _
      $region48: #{wfu_forward.1} parent=11 // pred_fallthru
        _
    $region12: #{wfu_forward.1} parent=5 // pred_fallthru
      _
    %p418 = scmp.lt.s32.totalorder %s19, 4
    // Predicated region
    $region49: #{wfu_forward.1} parent=5 // pred_check
      %p419 = pneg %p418
    $region50: #{wfu_forward.1} parent=5 // pred_check_branch
      %421 = sbr.rel (%p419) target = $region52
    $region51: #{wfu_forward.1} parent=5 // pred_region
      // Predicated region
      $region53: #{wfu_forward.1} parent=51 // pred_check
        %p422 = pneg %p53
      $region54: #{wfu_forward.1} parent=51 // pred_check_branch
        %424 = sbr.rel (%p422) target = $region56
      $region55: #{wfu_forward.1} parent=51 // pred_region
        %s425 = smul.u32 4, %s27
        %p426 = scmp.lt.s32.totalorder %s26, 1
        %s427 = scalar_select %p426, %s26, 1
        %p428 = scmp.lt.s32.totalorder %s425, 7
        %s429 = scalar_select %p428, %s425, 7
        %s430 = smul.addr %s429, 2
        %s431 = smul.addr %s427, 16
        %s432 = sadd.s32 %s430, %s431
        %s433 = smul.addr %s432, 8
        %s434 = scalar_lea.vmem %s0, %s433
        %s435 = smul.u32 4, %s27
      $region56: #{wfu_forward.1} parent=51 // pred_fallthru
        _
      // Predicated region
      $region57: #{wfu_forward.1} parent=51 // pred_check
        %p436 = pneg %p89
      $region58: #{wfu_forward.1} parent=51 // pred_check_branch
        %438 = sbr.rel (%p436) target = $region60
      $region59: #{wfu_forward.1} parent=51 // pred_region
        %s439 = smul.u32 %s27, 2
        %s440 = ssub.s32 %s439, 1
        %p441 = scmp.gt.s32.totalorder %s440, 0
        %s442 = scalar_select %p441, %s440, 0
        %s443 = smul.u32 2, %s442
        %p444 = scmp.lt.s32.totalorder %s26, 1
        %s445 = scalar_select %p444, %s26, 1
        %p446 = scmp.lt.s32.totalorder %s443, 7
        %s447 = scalar_select %p446, %s443, 7
        %s448 = smul.addr %s447, 2
        %s449 = smul.addr %s445, 16
        %s450 = sadd.s32 %s448, %s449
        %s451 = smul.addr %s450, 8
        %s452 = scalar_lea.vmem %s1, %s451
        %s453 = smul.u32 %s27, 2
        %s454 = ssub.s32 %s453, 1
        %p455 = scmp.gt.s32.totalorder %s454, 0
        %s456 = scalar_select %p455, %s454, 0
        %s457 = smul.u32 2, %s456
      $region60: #{wfu_forward.1} parent=51 // pred_fallthru
        _
      // Predicated region
      $region61: #{wfu_forward.1} parent=51 // pred_check
        %p458 = pneg %p125
      $region62: #{wfu_forward.1} parent=51 // pred_check_branch
        %460 = sbr.rel (%p458) target = $region64
      $region63: #{wfu_forward.1} parent=51 // pred_region
        %s461 = sadd.s32 %s27, 1
        %s462 = smul.u32 %s461, 2
        %p463 = scmp.lt.s32.totalorder %s462, 3
        %s464 = scalar_select %p463, %s462, 3
        %s465 = smul.u32 2, %s464
        %p466 = scmp.lt.s32.totalorder %s26, 1
        %s467 = scalar_select %p466, %s26, 1
        %p468 = scmp.lt.s32.totalorder %s465, 7
        %s469 = scalar_select %p468, %s465, 7
        %s470 = smul.addr %s469, 2
        %s471 = smul.addr %s467, 16
        %s472 = sadd.s32 %s470, %s471
        %s473 = smul.addr %s472, 8
        %s474 = scalar_lea.vmem %s2, %s473
        %s475 = sadd.s32 %s27, 1
        %s476 = smul.u32 %s475, 2
        %p477 = scmp.lt.s32.totalorder %s476, 3
        %s478 = scalar_select %p477, %s476, 3
        %s479 = smul.u32 2, %s478
      $region64: #{wfu_forward.1} parent=51 // pred_fallthru
        _
      // Predicated region
      $region65: #{wfu_forward.1} parent=51 // pred_check
        %p480 = pneg %p153
      $region66: #{wfu_forward.1} parent=51 // pred_check_branch
        %482 = sbr.rel (%p480) target = $region68
      $region67: #{wfu_forward.1} parent=51 // pred_region
        %s483 = smul.u32 4, %s27
        %p484 = scmp.lt.s32.totalorder %s26, 1
        %s485 = scalar_select %p484, %s26, 1
        %p486 = scmp.lt.s32.totalorder %s483, 7
        %s487 = scalar_select %p486, %s483, 7
        %s488 = smul.addr %s485, 8
        %s489 = sadd.s32 %s487, %s488
        %s490 = smul.addr %s489, 8
        %s491 = scalar_lea.vmem %s3, %s490
        %s492 = smul.u32 4, %s27
      $region68: #{wfu_forward.1} parent=51 // pred_fallthru
        _
    $region52: #{wfu_forward.1} parent=5 // pred_fallthru
      _
    %p493 = scmp.le.s32.totalorder 1, %s19
    %p494 = scmp.lt.s32.totalorder %s19, 5
    %p495 = pnand %p493, %p494
    %p496 = pneg %p495
    // Predicated region
    $region69: #{wfu_forward.1} parent=5 // pred_check
      _
    $region70: #{wfu_forward.1} parent=5 // pred_check_branch
      %498 = sbr.rel (%p495) target = $region72
    $region71: #{wfu_forward.1} parent=5 // pred_region
      %s499 = ssub.s32 %s19, 1
      %s500 = smul.u32 4, %s29
      %p501 = scmp.lt.s32.totalorder %s28, 1
      %s502 = scalar_select %p501, %s28, 1
      %p503 = scmp.lt.s32.totalorder %s500, 7
      %s504 = scalar_select %p503, %s500, 7
      %s505 = smul.addr %s504, 2
      %s506 = smul.addr %s502, 16
      %s507 = sadd.s32 %s505, %s506
      %s508 = smul.addr %s507, 8
      %s509 = scalar_lea.vmem %s0, %s508
      %p510 = pneg %p59
      %p511 = pneg %p56
      %s512 = smul.u32 %s29, 2
      %s513 = ssub.s32 %s512, 1
      %p514 = scmp.gt.s32.totalorder %s513, 0
      %s515 = scalar_select %p514, %s513, 0
      %s516 = smul.u32 2, %s515
      %p517 = scmp.lt.s32.totalorder %s28, 1
      %s518 = scalar_select %p517, %s28, 1
      %p519 = scmp.lt.s32.totalorder %s516, 7
      %s520 = scalar_select %p519, %s516, 7
      %s521 = smul.addr %s520, 2
      %s522 = smul.addr %s518, 16
      %s523 = sadd.s32 %s521, %s522
      %s524 = smul.addr %s523, 8
      %s525 = scalar_lea.vmem %s1, %s524
      %p526 = pneg %p95
      %p527 = pneg %p92
      %s528 = sadd.s32 %s29, 1
      %s529 = smul.u32 %s528, 2
      %p530 = scmp.lt.s32.totalorder %s529, 3
      %s531 = scalar_select %p530, %s529, 3
      %s532 = smul.u32 2, %s531
      %p533 = scmp.lt.s32.totalorder %s28, 1
      %s534 = scalar_select %p533, %s28, 1
      %p535 = scmp.lt.s32.totalorder %s532, 7
      %s536 = scalar_select %p535, %s532, 7
      %s537 = smul.addr %s536, 2
      %s538 = smul.addr %s534, 16
      %s539 = sadd.s32 %s537, %s538
      %s540 = smul.addr %s539, 8
      %s541 = scalar_lea.vmem %s2, %s540
      %p542 = pneg %p131
      %p543 = pneg %p128
      %s544 = smul.u32 4, %s29
      %p545 = scmp.lt.s32.totalorder %s28, 1
      %s546 = scalar_select %p545, %s28, 1
      %p547 = scmp.lt.s32.totalorder %s544, 7
      %s548 = scalar_select %p547, %s544, 7
      %s549 = smul.addr %s546, 8
      %s550 = sadd.s32 %s548, %s549
      %s551 = smul.addr %s550, 8
      %s552 = scalar_lea.vmem %s3, %s551
      %p553 = pneg %p159
      %p554 = pneg %p156
      %p555 = pneg %p180
      %p556 = pneg %p177
      %p557 = pneg %p201
      %p558 = pneg %p198
      %p559 = pneg %p222
      %p560 = pneg %p219
      %p561 = pneg %p243
      %p562 = pneg %p240
      %p563 = pneg %p264
      %p564 = pneg %p261
      %p565 = pneg %p285
      %p566 = pneg %p282
      %p567 = pneg %p306
      %p568 = pneg %p303
      %p569 = pneg %p327
      %p570 = pneg %p324
      %p571 = pneg %p348
      %p572 = pneg %p345
      %p573 = pneg %p376
      %p574 = pneg %p373
      %s575 = smul.u32 4, %s29
      %p576 = scmp.lt.s32.totalorder %s28, 1
      %s577 = scalar_select %p576, %s28, 1
      %p578 = scmp.lt.s32.totalorder %s575, 7
      %s579 = scalar_select %p578, %s575, 7
      %s580 = smul.addr %s579, 2
      %s581 = smul.addr %s577, 16
      %s582 = sadd.s32 %s580, %s581
      %s583 = smul.addr %s582, 8
      %s584 = scalar_lea.vmem %s13, %s583
      %s585 = smul.u32 4, %s29
      %p586 = scmp.lt.s32.totalorder %s28, 1
      %s587 = scalar_select %p586, %s28, 1
      %p588 = scmp.lt.s32.totalorder %s585, 7
      %s589 = scalar_select %p588, %s585, 7
      %s590 = smul.addr %s589, 2
      %s591 = smul.addr %s587, 16
      %s592 = sadd.s32 %s590, %s591
      %s593 = smul.addr %s592, 8
      %s594 = scalar_lea.vmem %s0, %s593
      %s595 = smul.u32 4, %s29
      %s596 = smul.u32 %s29, 2
      %s597 = ssub.s32 %s596, 1
      %p598 = scmp.gt.s32.totalorder %s597, 0
      %s599 = scalar_select %p598, %s597, 0
      %s600 = smul.u32 2, %s599
      %p601 = scmp.lt.s32.totalorder %s28, 1
      %s602 = scalar_select %p601, %s28, 1
      %p603 = scmp.lt.s32.totalorder %s600, 7
      %s604 = scalar_select %p603, %s600, 7
      %s605 = smul.addr %s604, 2
      %s606 = smul.addr %s602, 16
      %s607 = sadd.s32 %s605, %s606
      %s608 = smul.addr %s607, 8
      %s609 = scalar_lea.vmem %s1, %s608
      %s610 = smul.u32 %s29, 2
      %s611 = ssub.s32 %s610, 1
      %p612 = scmp.gt.s32.totalorder %s611, 0
      %s613 = scalar_select %p612, %s611, 0
      %s614 = smul.u32 2, %s613
      %s615 = sadd.s32 %s29, 1
      %s616 = smul.u32 %s615, 2
      %p617 = scmp.lt.s32.totalorder %s616, 3
      %s618 = scalar_select %p617, %s616, 3
      %s619 = smul.u32 2, %s618
      %p620 = scmp.lt.s32.totalorder %s28, 1
      %s621 = scalar_select %p620, %s28, 1
      %p622 = scmp.lt.s32.totalorder %s619, 7
      %s623 = scalar_select %p622, %s619, 7
      %s624 = smul.addr %s623, 2
      %s625 = smul.addr %s621, 16
      %s626 = sadd.s32 %s624, %s625
      %s627 = smul.addr %s626, 8
      %s628 = scalar_lea.vmem %s2, %s627
      %s629 = sadd.s32 %s29, 1
      %s630 = smul.u32 %s629, 2
      %p631 = scmp.lt.s32.totalorder %s630, 3
      %s632 = scalar_select %p631, %s630, 3
      %s633 = smul.u32 2, %s632
      %s634 = smul.u32 4, %s29
      %p635 = scmp.lt.s32.totalorder %s28, 1
      %s636 = scalar_select %p635, %s28, 1
      %p637 = scmp.lt.s32.totalorder %s634, 7
      %s638 = scalar_select %p637, %s634, 7
      %s639 = smul.addr %s636, 8
      %s640 = sadd.s32 %s638, %s639
      %s641 = smul.addr %s640, 8
      %s642 = scalar_lea.vmem %s3, %s641
      %s643 = smul.u32 4, %s29
      %s644 = smul.u32 4, %s29
      %p645 = scmp.lt.s32.totalorder %s28, 1
      %s646 = scalar_select %p645, %s28, 1
      %p647 = scmp.lt.s32.totalorder %s644, 7
      %s648 = scalar_select %p647, %s644, 7
      %s649 = smul.addr %s648, 2
      %s650 = smul.addr %s646, 16
      %s651 = sadd.s32 %s649, %s650
      %s652 = smul.addr %s651, 8
      %s653 = scalar_lea.vmem %s13, %s652
      %s654 = smul.u32 4, %s29
      %vm656 = vcmask 27648
      %657 = vst.msk [vmem:[#allocation2] sm:$0xf] %vm656, 0
      %658 = vst.msk [vmem:[#allocation2 + $0xc] sm:$0xf] %vm656, 0
      %659 = vst.msk [vmem:[#allocation2 + $0x18] sm:$0xf] %vm656, 0
      %660 = vst.msk [vmem:[#allocation2 + $0x24] sm:$0xf] %vm656, 0
      %661 = vst.msk [vmem:[#allocation2 + $0x30] sm:$0xf] %vm656, 0
      %662 = vst.msk [vmem:[#allocation2 + $0x3c] sm:$0xf] %vm656, 0
      %663 = vst.msk [vmem:[#allocation2 + $0x48] sm:$0xf] %vm656, 0
      %664 = vst.msk [vmem:[#allocation2 + $0x54] sm:$0xf] %vm656, 0
      %665 = vst.msk [vmem:[#allocation2 + $0x8] sm:$0xf] %vm656, 0
      %666 = vst.msk [vmem:[#allocation2 + $0x14] sm:$0xf] %vm656, 0
      %667 = vst.msk [vmem:[#allocation2 + $0x20] sm:$0xf] %vm656, 0
      %668 = vst.msk [vmem:[#allocation2 + $0x2c] sm:$0xf] %vm656, 0
      %669 = vst.msk [vmem:[#allocation2 + $0x38] sm:$0xf] %vm656, 0
      %670 = vst.msk [vmem:[#allocation2 + $0x44] sm:$0xf] %vm656, 0
      %671 = vst.msk [vmem:[#allocation2 + $0x50] sm:$0xf] %vm656, 0
      %672 = vst.msk [vmem:[#allocation2 + $0x5c] sm:$0xf] %vm656, 0
      %v673 = vld [vmem:[%s594] sm:$0xff]
      %v674 = vld [vmem:[%s594 + $0x8] sm:$0xff]
      %v675 = vld [vmem:[%s594 + $0x10] sm:$0xff]
      %v676 = vld [vmem:[%s594 + $0x18] sm:$0xff]
      %v677 = vld [vmem:[%s594 + $0x20] sm:$0xff]
      %v678 = vld [vmem:[%s594 + $0x28] sm:$0xff]
      %v679 = vld [vmem:[%s594 + $0x30] sm:$0xff]
      %v680 = vld [vmem:[%s594 + $0x38] sm:$0xff]
      %685 = vrot.lane.b32.xlu0 %v673, 124
      %v686 = vpop.permute.xlu0 %685
      %687 = vrot.lane.b32.xlu0 %v675, 124
      %v688 = vpop.permute.xlu0 %687
      %689 = vrot.lane.b32.xlu0 %v677, 124
      %v690 = vpop.permute.xlu0 %689
      %691 = vrot.lane.b32.xlu0 %v679, 124
      %v692 = vpop.permute.xlu0 %691
      %v697 = vadd.f32 %v673, %v686
      %v698 = vadd.f32 %v675, %v688
      %v699 = vadd.f32 %v677, %v690
      %v700 = vadd.f32 %v679, %v692
      %v701 = vadd.f32 %v697, %v674
      %v702 = vadd.f32 %v698, %v676
      %v703 = vadd.f32 %v699, %v678
      %v704 = vadd.f32 %v700, %v680
      %709 = vrot.lane.b32.xlu0 %v674, 124
      %v710 = vpop.permute.xlu0 %709
      %711 = vrot.lane.b32.xlu0 %v676, 124
      %v712 = vpop.permute.xlu0 %711
      %713 = vrot.lane.b32.xlu0 %v678, 124
      %v714 = vpop.permute.xlu0 %713
      %715 = vrot.lane.b32.xlu0 %v680, 124
      %v716 = vpop.permute.xlu0 %715
      %v721 = vadd.f32 %v701, %v710
      %v722 = vadd.f32 %v702, %v712
      %v723 = vadd.f32 %v703, %v714
      %v724 = vadd.f32 %v704, %v716
      %v725 = vmul.f32 %v721, 0.25
      %v726 = vmul.f32 %v722, 0.25
      %v727 = vmul.f32 %v723, 0.25
      %v728 = vmul.f32 %v724, 0.25
      %v729 = vsub.f32 %v673, %v725
      %v730 = vsub.f32 %v675, %v726
      %v731 = vsub.f32 %v677, %v727
      %v732 = vsub.f32 %v679, %v728
      %v733 = vld [vmem:[%s609] sm:$0xff]
      %v734 = vld [vmem:[%s609 + $0x8] sm:$0xff]
      %v735 = vld [vmem:[%s609 + $0x10] sm:$0xff]
      %v736 = vld [vmem:[%s609 + $0x18] sm:$0xff]
      %739 = vrot.lane.b32.xlu0 %v733, 124
      %v740 = vpop.permute.xlu0 %739
      %741 = vrot.lane.b32.xlu0 %v735, 124
      %v742 = vpop.permute.xlu0 %741
      %v745 = vadd.f32 %v733, %v740
      %v746 = vadd.f32 %v735, %v742
      %v747 = vadd.f32 %v745, %v734
      %v748 = vadd.f32 %v746, %v736
      %751 = vrot.lane.b32.xlu0 %v734, 124
      %v752 = vpop.permute.xlu0 %751
      %753 = vrot.lane.b32.xlu0 %v736, 124
      %v754 = vpop.permute.xlu0 %753
      %v757 = vadd.f32 %v747, %v752
      %v758 = vadd.f32 %v748, %v754
      %v759 = vmul.f32 %v757, 0.25
      %v760 = vmul.f32 %v758, 0.25
      %v761 = vsub.f32 %v733, %v759
      %v762 = vsub.f32 %v735, %v760
      %v763 = vld [vmem:[%s628] sm:$0xff]
      %v764 = vld [vmem:[%s628 + $0x8] sm:$0xff]
      %v765 = vld [vmem:[%s628 + $0x10] sm:$0xff]
      %v766 = vld [vmem:[%s628 + $0x18] sm:$0xff]
      %769 = vrot.lane.b32.xlu0 %v763, 124
      %v770 = vpop.permute.xlu0 %769
      %771 = vrot.lane.b32.xlu0 %v765, 124
      %v772 = vpop.permute.xlu0 %771
      %v775 = vadd.f32 %v763, %v770
      %v776 = vadd.f32 %v765, %v772
      %v777 = vadd.f32 %v775, %v764
      %v778 = vadd.f32 %v776, %v766
      %781 = vrot.lane.b32.xlu0 %v764, 124
      %v782 = vpop.permute.xlu0 %781
      %783 = vrot.lane.b32.xlu0 %v766, 124
      %v784 = vpop.permute.xlu0 %783
      %v787 = vadd.f32 %v777, %v782
      %v788 = vadd.f32 %v778, %v784
      %v789 = vmul.f32 %v787, 0.25
      %v790 = vmul.f32 %v788, 0.25
      %v791 = vsub.f32 %v763, %v789
      %v792 = vsub.f32 %v765, %v790
      %p793 = scmp.eq.s32.totalorder %s29, 0
      %s794 = scalar_select %p793, 1, 0
      %v795 = vstv %s794
      %vm796 = vcmp.eq.s32.totalorder %v795, 1
      %v797 = vsel %vm796, 0.0, %v761
      %v798 = vsel %vm796, 0.0, %v762
      %p799 = scmp.eq.s32.totalorder %s29, 1
      %s800 = scalar_select %p799, 1, 0
      %v801 = vstv %s800
      %vm802 = vcmp.eq.s32.totalorder %v801, 1
      %v803 = vsel %vm802, 0.0, %v791
      %v804 = vsel %vm802, 0.0, %v792
      %v805 = vpack.c.bf16 %v797, %v797
      %v806 = vpack.c.bf16 %v798, %v798
      %807 = vst.msk [vmem:[#allocation2 + $0x4] sm:$0xf] %vm656, %v805
      %808 = vst.msk [vmem:[#allocation2 + $0x10] sm:$0xf] %vm656, %v806
      %v809 = vpack.c.bf16 %v729, %v729
      %v810 = vpack.c.bf16 %v730, %v730
      %v811 = vpack.c.bf16 %v731, %v731
      %v812 = vpack.c.bf16 %v732, %v732
      %s813 = scalar_lea.vmem [#allocation2], 24
      %814 = vst.msk [vmem:[%s813 + $0x4] sm:$0xf] %vm656, %v809
      %815 = vst.msk [vmem:[%s813 + $0x10] sm:$0xf] %vm656, %v810
      %816 = vst.msk [vmem:[%s813 + $0x1c] sm:$0xf] %vm656, %v811
      %817 = vst.msk [vmem:[%s813 + $0x28] sm:$0xf] %vm656, %v812
      %v818 = vpack.c.bf16 %v803, %v803
      %v819 = vpack.c.bf16 %v804, %v804
      %s820 = scalar_lea.vmem [#allocation2], 72
      %821 = vst.msk [vmem:[%s820 + $0x4] sm:$0xf] %vm656, %v818
      %822 = vst.msk [vmem:[%s820 + $0x10] sm:$0xf] %vm656, %v819
      %v823 = vld [vmem:[#allocation2] sm:$0xf]
      %v824 = vld [vmem:[#allocation2 + $0x4] sm:$0xf]
      %v825 = vld [vmem:[#allocation2 + $0x8] sm:$0xf]
      %v826 = vld [vmem:[#allocation2 + $0xc] sm:$0xf]
      %v827 = vld [vmem:[#allocation2 + $0x10] sm:$0xf]
      %v828 = vld [vmem:[#allocation2 + $0x14] sm:$0xf]
      %v829 = vld [vmem:[#allocation2 + $0x18] sm:$0xf]
      %v830 = vld [vmem:[#allocation2 + $0x1c] sm:$0xf]
      %v831 = vld [vmem:[#allocation2 + $0x20] sm:$0xf]
      %v832 = vld [vmem:[#allocation2 + $0x24] sm:$0xf]
      %v833 = vld [vmem:[#allocation2 + $0x28] sm:$0xf]
      %v834 = vld [vmem:[#allocation2 + $0x2c] sm:$0xf]
      %v835 = vld [vmem:[#allocation2 + $0x30] sm:$0xf]
      %v836 = vld [vmem:[#allocation2 + $0x34] sm:$0xf]
      %v837 = vld [vmem:[#allocation2 + $0x38] sm:$0xf]
      %v838 = vld [vmem:[#allocation2 + $0x3c] sm:$0xf]
      %v839 = vld [vmem:[#allocation2 + $0x40] sm:$0xf]
      %v840 = vld [vmem:[#allocation2 + $0x44] sm:$0xf]
      %v841 = vld [vmem:[#allocation2 + $0x48] sm:$0xf]
      %v842 = vld [vmem:[#allocation2 + $0x4c] sm:$0xf]
      %v843 = vld [vmem:[#allocation2 + $0x50] sm:$0xf]
      %v844 = vld [vmem:[#allocation2 + $0x54] sm:$0xf]
      %v845 = vld [vmem:[#allocation2 + $0x58] sm:$0xf]
      %v846 = vld [vmem:[#allocation2 + $0x5c] sm:$0xf]
      %vm847 = vsmask.f32 256
      %vm848 = vsmask.f32 4368
      %vm849 = vmor %vm847, %vm848
      %v851 = vshrl.u32 %v823, 16
      %v853 = vrot.slane %v851, 7
      %v854 = vrot.slane %v853, 4
      %v856 = vshrl.u32 %v824, 16
      %v858 = vrot.slane %v856, 7
      %v859 = vshll.u32 %v824, 16
      %v861 = vor.u32 %v858, %v859
      %v862 = vsel %vm849, %v854, %v861
      %v864 = vshrl.u32 %v826, 16
      %v866 = vrot.slane %v864, 7
      %v867 = vrot.slane %v866, 4
      %v869 = vshrl.u32 %v827, 16
      %v871 = vrot.slane %v869, 7
      %v872 = vshll.u32 %v827, 16
      %v874 = vor.u32 %v871, %v872
      %v875 = vsel %vm849, %v867, %v874
      %v877 = vshrl.u32 %v829, 16
      %v879 = vrot.slane %v877, 7
      %v880 = vrot.slane %v879, 4
      %v882 = vshrl.u32 %v830, 16
      %v884 = vrot.slane %v882, 7
      %v885 = vshll.u32 %v830, 16
      %v887 = vor.u32 %v884, %v885
      %v888 = vsel %vm849, %v880, %v887
      %v890 = vshrl.u32 %v832, 16
      %v892 = vrot.slane %v890, 7
      %v893 = vrot.slane %v892, 4
      %v895 = vshrl.u32 %v833, 16
      %v897 = vrot.slane %v895, 7
      %v898 = vshll.u32 %v833, 16
      %v900 = vor.u32 %v897, %v898
      %v901 = vsel %vm849, %v893, %v900
      %v903 = vshrl.u32 %v835, 16
      %v905 = vrot.slane %v903, 7
      %v906 = vrot.slane %v905, 4
      %v908 = vshrl.u32 %v836, 16
      %v910 = vrot.slane %v908, 7
      %v911 = vshll.u32 %v836, 16
      %v913 = vor.u32 %v910, %v911
      %v914 = vsel %vm849, %v906, %v913
      %v916 = vshrl.u32 %v838, 16
      %v918 = vrot.slane %v916, 7
      %v919 = vrot.slane %v918, 4
      %v921 = vshrl.u32 %v839, 16
      %v923 = vrot.slane %v921, 7
      %v924 = vshll.u32 %v839, 16
      %v926 = vor.u32 %v923, %v924
      %v927 = vsel %vm849, %v919, %v926
      %v928 = vld [vmem:[%s4] sm:$0x3]
      %s929 = scalar_lea.vmem %s4, 2
      %v930 = vld [vmem:[%s929] sm:$0x3]
      %v937 = vunpack.c.l.b16 %v824
      %v938 = vunpack.c.l.b16 %v827
      %v939 = vunpack.c.l.b16 %v830
      %v940 = vunpack.c.l.b16 %v833
      %v941 = vunpack.c.l.b16 %v836
      %v942 = vunpack.c.l.b16 %v839
      %v943 = vpack.c.b16 %v938, %v937
      %v944 = vpack.c.b16 %v940, %v939
      %v945 = vpack.c.b16 %v942, %v941
      %vm946 = vcmask 31744
      %v948 = vsel %vm946, %v943, 0
      %v951 = vsel %vm946, %v944, 0
      %v954 = vsel %vm946, %v945, 0
      %vm956 = vcmask 1041408
      %v958 = vsel %vm956, %v930, 0
      %960 = vmatpush.bf16.msra.mxu0 0
      %961 = vmatpush.bf16.msra.mxu0 0
      %962 = vmatpush.bf16.msra.mxu0 0
      %963 = vmatpush.bf16.msra.mxu0 0
      %964 = vmatpush.bf16.msra.mxu0 0
      %965 = vmatpush.bf16.msra.mxu0 0
      %966 = vmatpush.bf16.msra.mxu0 0
      %967 = vmatpush.bf16.msra.mxu0 %v958
      %968 = vmatmul.bf16.gmra.mxu0 %v948
      %v969 = vpop.f32.mrf.mxu0
      %v970 = vadd.f32 0.0, %v969
      %v971 = vpop.f32.mrf.mxu0
      %v972 = vadd.f32 0.0, %v971
      %973 = vmatmul.bf16.gmra.mxu0 %v951
      %v974 = vpop.f32.mrf.mxu0
      %v975 = vadd.f32 0.0, %v974
      %v976 = vpop.f32.mrf.mxu0
      %v977 = vadd.f32 0.0, %v976
      %978 = vmatmul.bf16.gmra.mxu0 %v954
      %v979 = vpop.f32.mrf.mxu0
      %v980 = vadd.f32 0.0, %v979
      %v981 = vpop.f32.mrf.mxu0
      %v982 = vadd.f32 0.0, %v981
      %983 = vdwg.mxu0
      %v984 = vunpack.c.l.b16 %v862
      %v985 = vunpack.c.l.b16 %v875
      %v986 = vunpack.c.l.b16 %v888
      %v987 = vunpack.c.l.b16 %v901
      %v988 = vunpack.c.l.b16 %v914
      %v989 = vunpack.c.l.b16 %v927
      %v990 = vpack.c.b16 %v985, %v984
      %v991 = vpack.c.b16 %v987, %v986
      %v992 = vpack.c.b16 %v989, %v988
      %v994 = vsel %vm946, %v990, 0
      %v997 = vsel %vm946, %v991, 0
      %v1000 = vsel %vm946, %v992, 0
      %v1003 = vsel %vm956, %v928, 0
      %1005 = vmatpush.bf16.msra.mxu0 0
      %1006 = vmatpush.bf16.msra.mxu0 0
      %1007 = vmatpush.bf16.msra.mxu0 0
      %1008 = vmatpush.bf16.msra.mxu0 0
      %1009 = vmatpush.bf16.msra.mxu0 0
      %1010 = vmatpush.bf16.msra.mxu0 0
      %1011 = vmatpush.bf16.msra.mxu0 0
      %1012 = vmatpush.bf16.msra.mxu0 %v1003
      %1013 = vmatmul.bf16.gmra.mxu0 %v994
      %v1014 = vpop.f32.mrf.mxu0
      %v1015 = vadd.f32 %v970, %v1014
      %v1016 = vpop.f32.mrf.mxu0
      %v1017 = vadd.f32 %v972, %v1016
      %1018 = vmatmul.bf16.gmra.mxu0 %v997
      %v1019 = vpop.f32.mrf.mxu0
      %v1020 = vadd.f32 %v975, %v1019
      %v1021 = vpop.f32.mrf.mxu0
      %v1022 = vadd.f32 %v977, %v1021
      %1023 = vmatmul.bf16.gmra.mxu0 %v1000
      %v1024 = vpop.f32.mrf.mxu0
      %v1025 = vadd.f32 %v980, %v1024
      %v1026 = vpop.f32.mrf.mxu0
      %v1027 = vadd.f32 %v982, %v1026
      %1028 = vdwg.mxu0
      %vm1029 = vsmask.f32 3328
      %vm1030 = vsmask.f32 7440
      %vm1031 = vmor %vm1029, %vm1030
      %v1032 = vrot.slane %v856, 4
      %v1033 = vrot.slane %v859, 5
      %v1034 = vor.u32 %v1032, %v1033
      %v1035 = vrot.slane %v1034, 4
      %v1037 = vshll.u32 %v825, 16
      %v1039 = vrot.slane %v1037, 5
      %v1040 = vsel %vm1031, %v1035, %v1039
      %v1041 = vrot.slane %v869, 4
      %v1042 = vrot.slane %v872, 5
      %v1043 = vor.u32 %v1041, %v1042
      %v1044 = vrot.slane %v1043, 4
      %v1046 = vshll.u32 %v828, 16
      %v1048 = vrot.slane %v1046, 5
      %v1049 = vsel %vm1031, %v1044, %v1048
      %v1050 = vrot.slane %v882, 4
      %v1051 = vrot.slane %v885, 5
      %v1052 = vor.u32 %v1050, %v1051
      %v1053 = vrot.slane %v1052, 4
      %v1055 = vshll.u32 %v831, 16
      %v1057 = vrot.slane %v1055, 5
      %v1058 = vsel %vm1031, %v1053, %v1057
      %v1059 = vrot.slane %v895, 4
      %v1060 = vrot.slane %v898, 5
      %v1061 = vor.u32 %v1059, %v1060
      %v1062 = vrot.slane %v1061, 4
      %v1064 = vshll.u32 %v834, 16
      %v1066 = vrot.slane %v1064, 5
      %v1067 = vsel %vm1031, %v1062, %v1066
      %v1068 = vrot.slane %v908, 4
      %v1069 = vrot.slane %v911, 5
      %v1070 = vor.u32 %v1068, %v1069
      %v1071 = vrot.slane %v1070, 4
      %v1073 = vshll.u32 %v837, 16
      %v1075 = vrot.slane %v1073, 5
      %v1076 = vsel %vm1031, %v1071, %v1075
      %v1077 = vrot.slane %v921, 4
      %v1078 = vrot.slane %v924, 5
      %v1079 = vor.u32 %v1077, %v1078
      %v1080 = vrot.slane %v1079, 4
      %v1082 = vshll.u32 %v840, 16
      %v1084 = vrot.slane %v1082, 5
      %v1085 = vsel %vm1031, %v1080, %v1084
      %s1086 = scalar_lea.vmem %s4, 4
      %v1087 = vld [vmem:[%s1086] sm:$0x3]
      %v1088 = vunpack.c.l.b16 %v1040
      %v1089 = vunpack.c.l.b16 %v1049
      %v1090 = vunpack.c.l.b16 %v1058
      %v1091 = vunpack.c.l.b16 %v1067
      %v1092 = vunpack.c.l.b16 %v1076
      %v1093 = vunpack.c.l.b16 %v1085
      %v1094 = vpack.c.b16 %v1089, %v1088
      %v1095 = vpack.c.b16 %v1091, %v1090
      %v1096 = vpack.c.b16 %v1093, %v1092
      %v1098 = vsel %vm946, %v1094, 0
      %v1101 = vsel %vm946, %v1095, 0
      %v1104 = vsel %vm946, %v1096, 0
      %v1107 = vsel %vm956, %v1087, 0
      %1109 = vmatpush.bf16.msra.mxu0 0
      %1110 = vmatpush.bf16.msra.mxu0 0
      %1111 = vmatpush.bf16.msra.mxu0 0
      %1112 = vmatpush.bf16.msra.mxu0 0
      %1113 = vmatpush.bf16.msra.mxu0 0
      %1114 = vmatpush.bf16.msra.mxu0 0
      %1115 = vmatpush.bf16.msra.mxu0 0
      %1116 = vmatpush.bf16.msra.mxu0 %v1107
      %1117 = vmatmul.bf16.gmra.mxu0 %v1098
      %v1118 = vpop.f32.mrf.mxu0
      %v1119 = vadd.f32 0.0, %v1118
      %v1120 = vpop.f32.mrf.mxu0
      %v1121 = vadd.f32 0.0, %v1120
      %1122 = vmatmul.bf16.gmra.mxu0 %v1101
      %v1123 = vpop.f32.mrf.mxu0
      %v1124 = vadd.f32 0.0, %v1123
      %v1125 = vpop.f32.mrf.mxu0
      %v1126 = vadd.f32 0.0, %v1125
      %1127 = vmatmul.bf16.gmra.mxu0 %v1104
      %v1128 = vpop.f32.mrf.mxu0
      %v1129 = vadd.f32 0.0, %v1128
      %v1130 = vpop.f32.mrf.mxu0
      %v1131 = vadd.f32 0.0, %v1130
      %1132 = vdwg.mxu0
      %v1133 = vadd.f32 %v1015, %v1119
      %v1134 = vadd.f32 %v1017, %v1121
      %v1135 = vadd.f32 %v1020, %v1124
      %v1136 = vadd.f32 %v1022, %v1126
      %v1137 = vadd.f32 %v1025, %v1129
      %v1138 = vadd.f32 %v1027, %v1131
      %v1140 = vshrl.u32 %v841, 16
      %v1142 = vrot.slane %v1140, 7
      %v1143 = vrot.slane %v1142, 4
      %v1145 = vshrl.u32 %v842, 16
      %v1147 = vrot.slane %v1145, 7
      %v1148 = vshll.u32 %v842, 16
      %v1150 = vor.u32 %v1147, %v1148
      %v1151 = vsel %vm849, %v1143, %v1150
      %s1152 = scalar_lea.vmem %s4, 6
      %v1153 = vld [vmem:[%s1152] sm:$0x3]
      %v1154 = vunpack.c.l.b16 %v1151
      %v1155 = vpack.c.b16 %v986, %v985
      %v1156 = vpack.c.b16 %v988, %v987
      %v1157 = vpack.c.b16 %v1154, %v989
      %v1159 = vsel %vm946, %v1155, 0
      %v1162 = vsel %vm946, %v1156, 0
      %v1165 = vsel %vm946, %v1157, 0
      %v1168 = vsel %vm956, %v1153, 0
      %1170 = vmatpush.bf16.msra.mxu0 0
      %1171 = vmatpush.bf16.msra.mxu0 0
      %1172 = vmatpush.bf16.msra.mxu0 0
      %1173 = vmatpush.bf16.msra.mxu0 0
      %1174 = vmatpush.bf16.msra.mxu0 0
      %1175 = vmatpush.bf16.msra.mxu0 0
      %1176 = vmatpush.bf16.msra.mxu0 0
      %1177 = vmatpush.bf16.msra.mxu0 %v1168
      %1178 = vmatmul.bf16.gmra.mxu0 %v1159
      %v1179 = vpop.f32.mrf.mxu0
      %v1180 = vadd.f32 0.0, %v1179
      %v1181 = vpop.f32.mrf.mxu0
      %v1182 = vadd.f32 0.0, %v1181
      %1183 = vmatmul.bf16.gmra.mxu0 %v1162
      %v1184 = vpop.f32.mrf.mxu0
      %v1185 = vadd.f32 0.0, %v1184
      %v1186 = vpop.f32.mrf.mxu0
      %v1187 = vadd.f32 0.0, %v1186
      %1188 = vmatmul.bf16.gmra.mxu0 %v1165
      %v1189 = vpop.f32.mrf.mxu0
      %v1190 = vadd.f32 0.0, %v1189
      %v1191 = vpop.f32.mrf.mxu0
      %v1192 = vadd.f32 0.0, %v1191
      %1193 = vdwg.mxu0
      %v1194 = vadd.f32 %v1133, %v1180
      %v1195 = vadd.f32 %v1134, %v1182
      %v1196 = vadd.f32 %v1135, %v1185
      %v1197 = vadd.f32 %v1136, %v1187
      %v1198 = vadd.f32 %v1137, %v1190
      %v1199 = vadd.f32 %v1138, %v1192
      %s1200 = scalar_lea.vmem %s4, 8
      %v1201 = vld [vmem:[%s1200] sm:$0x3]
      %v1203 = vunpack.c.l.b16 %v842
      %v1204 = vpack.c.b16 %v939, %v938
      %v1205 = vpack.c.b16 %v941, %v940
      %v1206 = vpack.c.b16 %v1203, %v942
      %v1208 = vsel %vm946, %v1204, 0
      %v1211 = vsel %vm946, %v1205, 0
      %v1214 = vsel %vm946, %v1206, 0
      %v1217 = vsel %vm956, %v1201, 0
      %1219 = vmatpush.bf16.msra.mxu0 0
      %1220 = vmatpush.bf16.msra.mxu0 0
      %1221 = vmatpush.bf16.msra.mxu0 0
      %1222 = vmatpush.bf16.msra.mxu0 0
      %1223 = vmatpush.bf16.msra.mxu0 0
      %1224 = vmatpush.bf16.msra.mxu0 0
      %1225 = vmatpush.bf16.msra.mxu0 0
      %1226 = vmatpush.bf16.msra.mxu0 %v1217
      %1227 = vmatmul.bf16.gmra.mxu0 %v1208
      %v1228 = vpop.f32.mrf.mxu0
      %v1229 = vadd.f32 0.0, %v1228
      %v1230 = vpop.f32.mrf.mxu0
      %v1231 = vadd.f32 0.0, %v1230
      %1232 = vmatmul.bf16.gmra.mxu0 %v1211
      %v1233 = vpop.f32.mrf.mxu0
      %v1234 = vadd.f32 0.0, %v1233
      %v1235 = vpop.f32.mrf.mxu0
      %v1236 = vadd.f32 0.0, %v1235
      %1237 = vmatmul.bf16.gmra.mxu0 %v1214
      %v1238 = vpop.f32.mrf.mxu0
      %v1239 = vadd.f32 0.0, %v1238
      %v1240 = vpop.f32.mrf.mxu0
      %v1241 = vadd.f32 0.0, %v1240
      %1242 = vdwg.mxu0
      %v1243 = vadd.f32 %v1194, %v1229
      %v1244 = vadd.f32 %v1195, %v1231
      %v1245 = vadd.f32 %v1196, %v1234
      %v1246 = vadd.f32 %v1197, %v1236
      %v1247 = vadd.f32 %v1198, %v1239
      %v1248 = vadd.f32 %v1199, %v1241
      %v1249 = vrot.slane %v1145, 4
      %v1250 = vrot.slane %v1148, 5
      %v1251 = vor.u32 %v1249, %v1250
      %v1252 = vrot.slane %v1251, 4
      %v1254 = vshll.u32 %v843, 16
      %v1256 = vrot.slane %v1254, 5
      %v1257 = vsel %vm1031, %v1252, %v1256
      %s1258 = scalar_lea.vmem %s4, 10
      %v1259 = vld [vmem:[%s1258] sm:$0x3]
      %v1260 = vunpack.c.l.b16 %v1257
      %v1261 = vpack.c.b16 %v1090, %v1089
      %v1262 = vpack.c.b16 %v1092, %v1091
      %v1263 = vpack.c.b16 %v1260, %v1093
      %v1265 = vsel %vm946, %v1261, 0
      %v1268 = vsel %vm946, %v1262, 0
      %v1271 = vsel %vm946, %v1263, 0
      %v1274 = vsel %vm956, %v1259, 0
      %1276 = vmatpush.bf16.msra.mxu0 0
      %1277 = vmatpush.bf16.msra.mxu0 0
      %1278 = vmatpush.bf16.msra.mxu0 0
      %1279 = vmatpush.bf16.msra.mxu0 0
      %1280 = vmatpush.bf16.msra.mxu0 0
      %1281 = vmatpush.bf16.msra.mxu0 0
      %1282 = vmatpush.bf16.msra.mxu0 0
      %1283 = vmatpush.bf16.msra.mxu0 %v1274
      %1284 = vmatmul.bf16.gmra.mxu0 %v1265
      %v1285 = vpop.f32.mrf.mxu0
      %v1286 = vadd.f32 0.0, %v1285
      %v1287 = vpop.f32.mrf.mxu0
      %v1288 = vadd.f32 0.0, %v1287
      %1289 = vmatmul.bf16.gmra.mxu0 %v1268
      %v1290 = vpop.f32.mrf.mxu0
      %v1291 = vadd.f32 0.0, %v1290
      %v1292 = vpop.f32.mrf.mxu0
      %v1293 = vadd.f32 0.0, %v1292
      %1294 = vmatmul.bf16.gmra.mxu0 %v1271
      %v1295 = vpop.f32.mrf.mxu0
      %v1296 = vadd.f32 0.0, %v1295
      %v1297 = vpop.f32.mrf.mxu0
      %v1298 = vadd.f32 0.0, %v1297
      %1299 = vdwg.mxu0
      %v1300 = vadd.f32 %v1243, %v1286
      %v1301 = vadd.f32 %v1244, %v1288
      %v1302 = vadd.f32 %v1245, %v1291
      %v1303 = vadd.f32 %v1246, %v1293
      %v1304 = vadd.f32 %v1247, %v1296
      %v1305 = vadd.f32 %v1248, %v1298
      %v1307 = vshrl.u32 %v844, 16
      %v1309 = vrot.slane %v1307, 7
      %v1310 = vrot.slane %v1309, 4
      %v1312 = vshrl.u32 %v845, 16
      %v1314 = vrot.slane %v1312, 7
      %v1315 = vshll.u32 %v845, 16
      %v1317 = vor.u32 %v1314, %v1315
      %v1318 = vsel %vm849, %v1310, %v1317
      %s1319 = scalar_lea.vmem %s4, 12
      %v1320 = vld [vmem:[%s1319] sm:$0x3]
      %v1321 = vunpack.c.l.b16 %v1318
      %v1322 = vpack.c.b16 %v1321, %v1154
      %v1324 = vsel %vm946, %v1322, 0
      %v1327 = vsel %vm956, %v1320, 0
      %1329 = vmatpush.bf16.msra.mxu0 0
      %1330 = vmatpush.bf16.msra.mxu0 0
      %1331 = vmatpush.bf16.msra.mxu0 0
      %1332 = vmatpush.bf16.msra.mxu0 0
      %1333 = vmatpush.bf16.msra.mxu0 0
      %1334 = vmatpush.bf16.msra.mxu0 0
      %1335 = vmatpush.bf16.msra.mxu0 0
      %1336 = vmatpush.bf16.msra.mxu0 %v1327
      %1337 = vmatmul.bf16.gmra.mxu0 %v997
      %v1338 = vpop.f32.mrf.mxu0
      %v1339 = vadd.f32 0.0, %v1338
      %v1340 = vpop.f32.mrf.mxu0
      %v1341 = vadd.f32 0.0, %v1340
      %1342 = vmatmul.bf16.gmra.mxu0 %v1000
      %v1343 = vpop.f32.mrf.mxu0
      %v1344 = vadd.f32 0.0, %v1343
      %v1345 = vpop.f32.mrf.mxu0
      %v1346 = vadd.f32 0.0, %v1345
      %1347 = vmatmul.bf16.gmra.mxu0 %v1324
      %v1348 = vpop.f32.mrf.mxu0
      %v1349 = vadd.f32 0.0, %v1348
      %v1350 = vpop.f32.mrf.mxu0
      %v1351 = vadd.f32 0.0, %v1350
      %1352 = vdwg.mxu0
      %v1353 = vadd.f32 %v1300, %v1339
      %v1354 = vadd.f32 %v1301, %v1341
      %v1355 = vadd.f32 %v1302, %v1344
      %v1356 = vadd.f32 %v1303, %v1346
      %v1357 = vadd.f32 %v1304, %v1349
      %v1358 = vadd.f32 %v1305, %v1351
      %s1359 = scalar_lea.vmem %s4, 14
      %v1360 = vld [vmem:[%s1359] sm:$0x3]
      %v1362 = vunpack.c.l.b16 %v845
      %v1363 = vpack.c.b16 %v1362, %v1203
      %v1365 = vsel %vm946, %v1363, 0
      %v1368 = vsel %vm956, %v1360, 0
      %1370 = vmatpush.bf16.msra.mxu0 0
      %1371 = vmatpush.bf16.msra.mxu0 0
      %1372 = vmatpush.bf16.msra.mxu0 0
      %1373 = vmatpush.bf16.msra.mxu0 0
      %1374 = vmatpush.bf16.msra.mxu0 0
      %1375 = vmatpush.bf16.msra.mxu0 0
      %1376 = vmatpush.bf16.msra.mxu0 0
      %1377 = vmatpush.bf16.msra.mxu0 %v1368
      %1378 = vmatmul.bf16.gmra.mxu0 %v951
      %v1379 = vpop.f32.mrf.mxu0
      %v1380 = vadd.f32 0.0, %v1379
      %v1381 = vpop.f32.mrf.mxu0
      %v1382 = vadd.f32 0.0, %v1381
      %1383 = vmatmul.bf16.gmra.mxu0 %v954
      %v1384 = vpop.f32.mrf.mxu0
      %v1385 = vadd.f32 0.0, %v1384
      %v1386 = vpop.f32.mrf.mxu0
      %v1387 = vadd.f32 0.0, %v1386
      %1388 = vmatmul.bf16.gmra.mxu0 %v1365
      %v1389 = vpop.f32.mrf.mxu0
      %v1390 = vadd.f32 0.0, %v1389
      %v1391 = vpop.f32.mrf.mxu0
      %v1392 = vadd.f32 0.0, %v1391
      %1393 = vdwg.mxu0
      %v1394 = vadd.f32 %v1353, %v1380
      %v1395 = vadd.f32 %v1354, %v1382
      %v1396 = vadd.f32 %v1355, %v1385
      %v1397 = vadd.f32 %v1356, %v1387
      %v1398 = vadd.f32 %v1357, %v1390
      %v1399 = vadd.f32 %v1358, %v1392
      %v1400 = vrot.slane %v1312, 4
      %v1401 = vrot.slane %v1315, 5
      %v1402 = vor.u32 %v1400, %v1401
      %v1403 = vrot.slane %v1402, 4
      %v1405 = vshll.u32 %v846, 16
      %v1407 = vrot.slane %v1405, 5
      %v1408 = vsel %vm1031, %v1403, %v1407
      %s1409 = scalar_lea.vmem %s4, 16
      %v1410 = vld [vmem:[%s1409] sm:$0x3]
      %v1411 = vunpack.c.l.b16 %v1408
      %v1412 = vpack.c.b16 %v1411, %v1260
      %v1414 = vsel %vm946, %v1412, 0
      %v1417 = vsel %vm956, %v1410, 0
      %1419 = vmatpush.bf16.msra.mxu0 0
      %1420 = vmatpush.bf16.msra.mxu0 0
      %1421 = vmatpush.bf16.msra.mxu0 0
      %1422 = vmatpush.bf16.msra.mxu0 0
      %1423 = vmatpush.bf16.msra.mxu0 0
      %1424 = vmatpush.bf16.msra.mxu0 0
      %1425 = vmatpush.bf16.msra.mxu0 0
      %1426 = vmatpush.bf16.msra.mxu0 %v1417
      %1427 = vmatmul.bf16.gmra.mxu0 %v1101
      %v1428 = vpop.f32.mrf.mxu0
      %v1429 = vadd.f32 0.0, %v1428
      %v1430 = vpop.f32.mrf.mxu0
      %v1431 = vadd.f32 0.0, %v1430
      %1432 = vmatmul.bf16.gmra.mxu0 %v1104
      %v1433 = vpop.f32.mrf.mxu0
      %v1434 = vadd.f32 0.0, %v1433
      %v1435 = vpop.f32.mrf.mxu0
      %v1436 = vadd.f32 0.0, %v1435
      %1437 = vmatmul.bf16.gmra.mxu0 %v1414
      %v1438 = vpop.f32.mrf.mxu0
      %v1439 = vadd.f32 0.0, %v1438
      %v1440 = vpop.f32.mrf.mxu0
      %v1441 = vadd.f32 0.0, %v1440
      %1442 = vdwg.mxu0
      %v1443 = vadd.f32 %v1394, %v1429
      %v1444 = vadd.f32 %v1395, %v1431
      %v1445 = vadd.f32 %v1396, %v1434
      %v1446 = vadd.f32 %v1397, %v1436
      %v1447 = vadd.f32 %v1398, %v1439
      %v1448 = vadd.f32 %v1399, %v1441
      %v1449 = vld [vmem:[%s5] sm:$0x1]
      %v1451 = vperm.slane %v1449, 0
      %v1453 = vadd.f32 %v1443, %v1451
      %v1454 = vadd.f32 %v1444, %v1451
      %v1455 = vadd.f32 %v1445, %v1451
      %v1456 = vadd.f32 %v1446, %v1451
      %v1457 = vadd.f32 %v1447, %v1451
      %v1458 = vadd.f32 %v1448, %v1451
      %v1459 = vmax.f32 %v1453, 0.0
      %v1460 = vmax.f32 %v1454, 0.0
      %v1461 = vmax.f32 %v1455, 0.0
      %v1462 = vmax.f32 %v1456, 0.0
      %v1463 = vmax.f32 %v1457, 0.0
      %v1464 = vmax.f32 %v1458, 0.0
      %v1465 = vpack.c.bf16 %v1459, %v1459
      %v1466 = vpack.c.bf16 %v1460, %v1460
      %v1467 = vpack.c.bf16 %v1461, %v1461
      %v1468 = vpack.c.bf16 %v1462, %v1462
      %v1469 = vpack.c.bf16 %v1463, %v1463
      %v1470 = vpack.c.bf16 %v1464, %v1464
      %1471 = vst.msk [vmem:[#allocation2 + $0x4] sm:$0xf] %vm656, %v1465
      %1472 = vst.msk [vmem:[#allocation2 + $0x10] sm:$0xf] %vm656, %v1466
      %1473 = vst.msk [vmem:[#allocation2 + $0x1c] sm:$0xf] %vm656, %v1467
      %1474 = vst.msk [vmem:[#allocation2 + $0x28] sm:$0xf] %vm656, %v1468
      %1475 = vst.msk [vmem:[#allocation2 + $0x34] sm:$0xf] %vm656, %v1469
      %1476 = vst.msk [vmem:[#allocation2 + $0x40] sm:$0xf] %vm656, %v1470
      // Predicated region
      $region73: #{wfu_forward.1} parent=71 // pred_check
        %p1477 = pneg %p793
      $region74: #{wfu_forward.1} parent=71 // pred_check_branch
        %1479 = sbr.rel (%p1477) target = $region76
      $region75: #{wfu_forward.1} parent=71 // pred_region
        %1480 = vst.msk [vmem:[#allocation2 + $0x4] sm:$0xf] %vm656, 0
      $region76: #{wfu_forward.1} parent=71 // pred_fallthru
        _
      // Predicated region
      $region77: #{wfu_forward.1} parent=71 // pred_check
        %p1481 = pneg %p799
      $region78: #{wfu_forward.1} parent=71 // pred_check_branch
        %1483 = sbr.rel (%p1481) target = $region80
      $region79: #{wfu_forward.1} parent=71 // pred_region
        %s1484 = scalar_lea.vmem [#allocation2], 60
        %1485 = vst.msk [vmem:[%s1484 + $0x4] sm:$0xf] %vm656, 0
      $region80: #{wfu_forward.1} parent=71 // pred_fallthru
        _
      %v1486 = vld [vmem:[#allocation2] sm:$0xf]
      %v1487 = vld [vmem:[#allocation2 + $0x4] sm:$0xf]
      %v1488 = vld [vmem:[#allocation2 + $0x8] sm:$0xf]
      %v1489 = vld [vmem:[#allocation2 + $0xc] sm:$0xf]
      %v1490 = vld [vmem:[#allocation2 + $0x10] sm:$0xf]
      %v1491 = vld [vmem:[#allocation2 + $0x14] sm:$0xf]
      %v1492 = vld [vmem:[#allocation2 + $0x18] sm:$0xf]
      %v1493 = vld [vmem:[#allocation2 + $0x1c] sm:$0xf]
      %v1494 = vld [vmem:[#allocation2 + $0x20] sm:$0xf]
      %v1495 = vld [vmem:[#allocation2 + $0x24] sm:$0xf]
      %v1496 = vld [vmem:[#allocation2 + $0x28] sm:$0xf]
      %v1497 = vld [vmem:[#allocation2 + $0x2c] sm:$0xf]
      %v1498 = vld [vmem:[#allocation2 + $0x30] sm:$0xf]
      %v1499 = vld [vmem:[#allocation2 + $0x34] sm:$0xf]
      %v1500 = vld [vmem:[#allocation2 + $0x38] sm:$0xf]
      %v1501 = vld [vmem:[#allocation2 + $0x3c] sm:$0xf]
      %v1502 = vld [vmem:[#allocation2 + $0x40] sm:$0xf]
      %v1503 = vld [vmem:[#allocation2 + $0x44] sm:$0xf]
      %v1505 = vshrl.u32 %v1486, 16
      %v1507 = vrot.slane %v1505, 7
      %v1508 = vrot.slane %v1507, 4
      %v1510 = vshrl.u32 %v1487, 16
      %v1512 = vrot.slane %v1510, 7
      %v1513 = vshll.u32 %v1487, 16
      %v1515 = vor.u32 %v1512, %v1513
      %v1516 = vsel %vm849, %v1508, %v1515
      %v1518 = vshrl.u32 %v1489, 16
      %v1520 = vrot.slane %v1518, 7
      %v1521 = vrot.slane %v1520, 4
      %v1523 = vshrl.u32 %v1490, 16
      %v1525 = vrot.slane %v1523, 7
      %v1526 = vshll.u32 %v1490, 16
      %v1528 = vor.u32 %v1525, %v1526
      %v1529 = vsel %vm849, %v1521, %v1528
      %v1531 = vshrl.u32 %v1492, 16
      %v1533 = vrot.slane %v1531, 7
      %v1534 = vrot.slane %v1533, 4
      %v1536 = vshrl.u32 %v1493, 16
      %v1538 = vrot.slane %v1536, 7
      %v1539 = vshll.u32 %v1493, 16
      %v1541 = vor.u32 %v1538, %v1539
      %v1542 = vsel %vm849, %v1534, %v1541
      %v1544 = vshrl.u32 %v1495, 16
      %v1546 = vrot.slane %v1544, 7
      %v1547 = vrot.slane %v1546, 4
      %v1549 = vshrl.u32 %v1496, 16
      %v1551 = vrot.slane %v1549, 7
      %v1552 = vshll.u32 %v1496, 16
      %v1554 = vor.u32 %v1551, %v1552
      %v1555 = vsel %vm849, %v1547, %v1554
      %v1556 = vld [vmem:[%s6] sm:$0x3]
      %s1557 = scalar_lea.vmem %s6, 2
      %v1558 = vld [vmem:[%s1557] sm:$0x3]
      %v1563 = vunpack.c.l.b16 %v1487
      %v1564 = vunpack.c.l.b16 %v1490
      %v1565 = vunpack.c.l.b16 %v1493
      %v1566 = vunpack.c.l.b16 %v1496
      %v1567 = vpack.c.b16 %v1564, %v1563
      %v1568 = vpack.c.b16 %v1566, %v1565
      %v1570 = vsel %vm946, %v1567, 0
      %v1573 = vsel %vm946, %v1568, 0
      %v1576 = vsel %vm956, %v1558, 0
      %1578 = vmatpush.bf16.msra.mxu0 0
      %1579 = vmatpush.bf16.msra.mxu0 0
      %1580 = vmatpush.bf16.msra.mxu0 0
      %1581 = vmatpush.bf16.msra.mxu0 0
      %1582 = vmatpush.bf16.msra.mxu0 0
      %1583 = vmatpush.bf16.msra.mxu0 0
      %1584 = vmatpush.bf16.msra.mxu0 0
      %1585 = vmatpush.bf16.msra.mxu0 %v1576
      %1586 = vmatmul.bf16.gmra.mxu0 %v1570
      %v1587 = vpop.f32.mrf.mxu0
      %v1588 = vadd.f32 0.0, %v1587
      %v1589 = vpop.f32.mrf.mxu0
      %v1590 = vadd.f32 0.0, %v1589
      %1591 = vmatmul.bf16.gmra.mxu0 %v1573
      %v1592 = vpop.f32.mrf.mxu0
      %v1593 = vadd.f32 0.0, %v1592
      %v1594 = vpop.f32.mrf.mxu0
      %v1595 = vadd.f32 0.0, %v1594
      %1596 = vdwg.mxu0
      %v1597 = vunpack.c.l.b16 %v1516
      %v1598 = vunpack.c.l.b16 %v1529
      %v1599 = vunpack.c.l.b16 %v1542
      %v1600 = vunpack.c.l.b16 %v1555
      %v1601 = vpack.c.b16 %v1598, %v1597
      %v1602 = vpack.c.b16 %v1600, %v1599
      %v1604 = vsel %vm946, %v1601, 0
      %v1607 = vsel %vm946, %v1602, 0
      %v1610 = vsel %vm956, %v1556, 0
      %1612 = vmatpush.bf16.msra.mxu0 0
      %1613 = vmatpush.bf16.msra.mxu0 0
      %1614 = vmatpush.bf16.msra.mxu0 0
      %1615 = vmatpush.bf16.msra.mxu0 0
      %1616 = vmatpush.bf16.msra.mxu0 0
      %1617 = vmatpush.bf16.msra.mxu0 0
      %1618 = vmatpush.bf16.msra.mxu0 0
      %1619 = vmatpush.bf16.msra.mxu0 %v1610
      %1620 = vmatmul.bf16.gmra.mxu0 %v1604
      %v1621 = vpop.f32.mrf.mxu0
      %v1622 = vadd.f32 %v1588, %v1621
      %v1623 = vpop.f32.mrf.mxu0
      %v1624 = vadd.f32 %v1590, %v1623
      %1625 = vmatmul.bf16.gmra.mxu0 %v1607
      %v1626 = vpop.f32.mrf.mxu0
      %v1627 = vadd.f32 %v1593, %v1626
      %v1628 = vpop.f32.mrf.mxu0
      %v1629 = vadd.f32 %v1595, %v1628
      %1630 = vdwg.mxu0
      %v1631 = vrot.slane %v1510, 4
      %v1632 = vrot.slane %v1513, 5
      %v1633 = vor.u32 %v1631, %v1632
      %v1634 = vrot.slane %v1633, 4
      %v1636 = vshll.u32 %v1488, 16
      %v1638 = vrot.slane %v1636, 5
      %v1639 = vsel %vm1031, %v1634, %v1638
      %v1640 = vrot.slane %v1523, 4
      %v1641 = vrot.slane %v1526, 5
      %v1642 = vor.u32 %v1640, %v1641
      %v1643 = vrot.slane %v1642, 4
      %v1645 = vshll.u32 %v1491, 16
      %v1647 = vrot.slane %v1645, 5
      %v1648 = vsel %vm1031, %v1643, %v1647
      %v1649 = vrot.slane %v1536, 4
      %v1650 = vrot.slane %v1539, 5
      %v1651 = vor.u32 %v1649, %v1650
      %v1652 = vrot.slane %v1651, 4
      %v1654 = vshll.u32 %v1494, 16
      %v1656 = vrot.slane %v1654, 5
      %v1657 = vsel %vm1031, %v1652, %v1656
      %v1658 = vrot.slane %v1549, 4
      %v1659 = vrot.slane %v1552, 5
      %v1660 = vor.u32 %v1658, %v1659
      %v1661 = vrot.slane %v1660, 4
      %v1663 = vshll.u32 %v1497, 16
      %v1665 = vrot.slane %v1663, 5
      %v1666 = vsel %vm1031, %v1661, %v1665
      %s1667 = scalar_lea.vmem %s6, 4
      %v1668 = vld [vmem:[%s1667] sm:$0x3]
      %v1669 = vunpack.c.l.b16 %v1639
      %v1670 = vunpack.c.l.b16 %v1648
      %v1671 = vunpack.c.l.b16 %v1657
      %v1672 = vunpack.c.l.b16 %v1666
      %v1673 = vpack.c.b16 %v1670, %v1669
      %v1674 = vpack.c.b16 %v1672, %v1671
      %v1676 = vsel %vm946, %v1673, 0
      %v1679 = vsel %vm946, %v1674, 0
      %v1682 = vsel %vm956, %v1668, 0
      %1684 = vmatpush.bf16.msra.mxu0 0
      %1685 = vmatpush.bf16.msra.mxu0 0
      %1686 = vmatpush.bf16.msra.mxu0 0
      %1687 = vmatpush.bf16.msra.mxu0 0
      %1688 = vmatpush.bf16.msra.mxu0 0
      %1689 = vmatpush.bf16.msra.mxu0 0
      %1690 = vmatpush.bf16.msra.mxu0 0
      %1691 = vmatpush.bf16.msra.mxu0 %v1682
      %1692 = vmatmul.bf16.gmra.mxu0 %v1676
      %v1693 = vpop.f32.mrf.mxu0
      %v1694 = vadd.f32 0.0, %v1693
      %v1695 = vpop.f32.mrf.mxu0
      %v1696 = vadd.f32 0.0, %v1695
      %1697 = vmatmul.bf16.gmra.mxu0 %v1679
      %v1698 = vpop.f32.mrf.mxu0
      %v1699 = vadd.f32 0.0, %v1698
      %v1700 = vpop.f32.mrf.mxu0
      %v1701 = vadd.f32 0.0, %v1700
      %1702 = vdwg.mxu0
      %v1703 = vadd.f32 %v1622, %v1694
      %v1704 = vadd.f32 %v1624, %v1696
      %v1705 = vadd.f32 %v1627, %v1699
      %v1706 = vadd.f32 %v1629, %v1701
      %v1708 = vshrl.u32 %v1498, 16
      %v1710 = vrot.slane %v1708, 7
      %v1711 = vrot.slane %v1710, 4
      %v1713 = vshrl.u32 %v1499, 16
      %v1715 = vrot.slane %v1713, 7
      %v1716 = vshll.u32 %v1499, 16
      %v1718 = vor.u32 %v1715, %v1716
      %v1719 = vsel %vm849, %v1711, %v1718
      %s1720 = scalar_lea.vmem %s6, 6
      %v1721 = vld [vmem:[%s1720] sm:$0x3]
      %v1722 = vunpack.c.l.b16 %v1719
      %v1723 = vpack.c.b16 %v1599, %v1598
      %v1724 = vpack.c.b16 %v1722, %v1600
      %v1726 = vsel %vm946, %v1723, 0
      %v1729 = vsel %vm946, %v1724, 0
      %v1732 = vsel %vm956, %v1721, 0
      %1734 = vmatpush.bf16.msra.mxu0 0
      %1735 = vmatpush.bf16.msra.mxu0 0
      %1736 = vmatpush.bf16.msra.mxu0 0
      %1737 = vmatpush.bf16.msra.mxu0 0
      %1738 = vmatpush.bf16.msra.mxu0 0
      %1739 = vmatpush.bf16.msra.mxu0 0
      %1740 = vmatpush.bf16.msra.mxu0 0
      %1741 = vmatpush.bf16.msra.mxu0 %v1732
      %1742 = vmatmul.bf16.gmra.mxu0 %v1726
      %v1743 = vpop.f32.mrf.mxu0
      %v1744 = vadd.f32 0.0, %v1743
      %v1745 = vpop.f32.mrf.mxu0
      %v1746 = vadd.f32 0.0, %v1745
      %1747 = vmatmul.bf16.gmra.mxu0 %v1729
      %v1748 = vpop.f32.mrf.mxu0
      %v1749 = vadd.f32 0.0, %v1748
      %v1750 = vpop.f32.mrf.mxu0
      %v1751 = vadd.f32 0.0, %v1750
      %1752 = vdwg.mxu0
      %v1753 = vadd.f32 %v1703, %v1744
      %v1754 = vadd.f32 %v1704, %v1746
      %v1755 = vadd.f32 %v1705, %v1749
      %v1756 = vadd.f32 %v1706, %v1751
      %s1757 = scalar_lea.vmem %s6, 8
      %v1758 = vld [vmem:[%s1757] sm:$0x3]
      %v1760 = vunpack.c.l.b16 %v1499
      %v1761 = vpack.c.b16 %v1565, %v1564
      %v1762 = vpack.c.b16 %v1760, %v1566
      %v1764 = vsel %vm946, %v1761, 0
      %v1767 = vsel %vm946, %v1762, 0
      %v1770 = vsel %vm956, %v1758, 0
      %1772 = vmatpush.bf16.msra.mxu0 0
      %1773 = vmatpush.bf16.msra.mxu0 0
      %1774 = vmatpush.bf16.msra.mxu0 0
      %1775 = vmatpush.bf16.msra.mxu0 0
      %1776 = vmatpush.bf16.msra.mxu0 0
      %1777 = vmatpush.bf16.msra.mxu0 0
      %1778 = vmatpush.bf16.msra.mxu0 0
      %1779 = vmatpush.bf16.msra.mxu0 %v1770
      %1780 = vmatmul.bf16.gmra.mxu0 %v1764
      %v1781 = vpop.f32.mrf.mxu0
      %v1782 = vadd.f32 0.0, %v1781
      %v1783 = vpop.f32.mrf.mxu0
      %v1784 = vadd.f32 0.0, %v1783
      %1785 = vmatmul.bf16.gmra.mxu0 %v1767
      %v1786 = vpop.f32.mrf.mxu0
      %v1787 = vadd.f32 0.0, %v1786
      %v1788 = vpop.f32.mrf.mxu0
      %v1789 = vadd.f32 0.0, %v1788
      %1790 = vdwg.mxu0
      %v1791 = vadd.f32 %v1753, %v1782
      %v1792 = vadd.f32 %v1754, %v1784
      %v1793 = vadd.f32 %v1755, %v1787
      %v1794 = vadd.f32 %v1756, %v1789
      %v1795 = vrot.slane %v1713, 4
      %v1796 = vrot.slane %v1716, 5
      %v1797 = vor.u32 %v1795, %v1796
      %v1798 = vrot.slane %v1797, 4
      %v1800 = vshll.u32 %v1500, 16
      %v1802 = vrot.slane %v1800, 5
      %v1803 = vsel %vm1031, %v1798, %v1802
      %s1804 = scalar_lea.vmem %s6, 10
      %v1805 = vld [vmem:[%s1804] sm:$0x3]
      %v1806 = vunpack.c.l.b16 %v1803
      %v1807 = vpack.c.b16 %v1671, %v1670
      %v1808 = vpack.c.b16 %v1806, %v1672
      %v1810 = vsel %vm946, %v1807, 0
      %v1813 = vsel %vm946, %v1808, 0
      %v1816 = vsel %vm956, %v1805, 0
      %1818 = vmatpush.bf16.msra.mxu0 0
      %1819 = vmatpush.bf16.msra.mxu0 0
      %1820 = vmatpush.bf16.msra.mxu0 0
      %1821 = vmatpush.bf16.msra.mxu0 0
      %1822 = vmatpush.bf16.msra.mxu0 0
      %1823 = vmatpush.bf16.msra.mxu0 0
      %1824 = vmatpush.bf16.msra.mxu0 0
      %1825 = vmatpush.bf16.msra.mxu0 %v1816
      %1826 = vmatmul.bf16.gmra.mxu0 %v1810
      %v1827 = vpop.f32.mrf.mxu0
      %v1828 = vadd.f32 0.0, %v1827
      %v1829 = vpop.f32.mrf.mxu0
      %v1830 = vadd.f32 0.0, %v1829
      %1831 = vmatmul.bf16.gmra.mxu0 %v1813
      %v1832 = vpop.f32.mrf.mxu0
      %v1833 = vadd.f32 0.0, %v1832
      %v1834 = vpop.f32.mrf.mxu0
      %v1835 = vadd.f32 0.0, %v1834
      %1836 = vdwg.mxu0
      %v1837 = vadd.f32 %v1791, %v1828
      %v1838 = vadd.f32 %v1792, %v1830
      %v1839 = vadd.f32 %v1793, %v1833
      %v1840 = vadd.f32 %v1794, %v1835
      %v1842 = vshrl.u32 %v1501, 16
      %v1844 = vrot.slane %v1842, 7
      %v1845 = vrot.slane %v1844, 4
      %v1847 = vshrl.u32 %v1502, 16
      %v1849 = vrot.slane %v1847, 7
      %v1850 = vshll.u32 %v1502, 16
      %v1852 = vor.u32 %v1849, %v1850
      %v1853 = vsel %vm849, %v1845, %v1852
      %s1854 = scalar_lea.vmem %s6, 12
      %v1855 = vld [vmem:[%s1854] sm:$0x3]
      %v1856 = vunpack.c.l.b16 %v1853
      %v1857 = vpack.c.b16 %v1856, %v1722
      %v1859 = vsel %vm946, %v1857, 0
      %v1862 = vsel %vm956, %v1855, 0
      %1864 = vmatpush.bf16.msra.mxu0 0
      %1865 = vmatpush.bf16.msra.mxu0 0
      %1866 = vmatpush.bf16.msra.mxu0 0
      %1867 = vmatpush.bf16.msra.mxu0 0
      %1868 = vmatpush.bf16.msra.mxu0 0
      %1869 = vmatpush.bf16.msra.mxu0 0
      %1870 = vmatpush.bf16.msra.mxu0 0
      %1871 = vmatpush.bf16.msra.mxu0 %v1862
      %1872 = vmatmul.bf16.gmra.mxu0 %v1607
      %v1873 = vpop.f32.mrf.mxu0
      %v1874 = vadd.f32 0.0, %v1873
      %v1875 = vpop.f32.mrf.mxu0
      %v1876 = vadd.f32 0.0, %v1875
      %1877 = vmatmul.bf16.gmra.mxu0 %v1859
      %v1878 = vpop.f32.mrf.mxu0
      %v1879 = vadd.f32 0.0, %v1878
      %v1880 = vpop.f32.mrf.mxu0
      %v1881 = vadd.f32 0.0, %v1880
      %1882 = vdwg.mxu0
      %v1883 = vadd.f32 %v1837, %v1874
      %v1884 = vadd.f32 %v1838, %v1876
      %v1885 = vadd.f32 %v1839, %v1879
      %v1886 = vadd.f32 %v1840, %v1881
      %s1887 = scalar_lea.vmem %s6, 14
      %v1888 = vld [vmem:[%s1887] sm:$0x3]
      %v1890 = vunpack.c.l.b16 %v1502
      %v1891 = vpack.c.b16 %v1890, %v1760
      %v1893 = vsel %vm946, %v1891, 0
      %v1896 = vsel %vm956, %v1888, 0
      %1898 = vmatpush.bf16.msra.mxu0 0
      %1899 = vmatpush.bf16.msra.mxu0 0
      %1900 = vmatpush.bf16.msra.mxu0 0
      %1901 = vmatpush.bf16.msra.mxu0 0
      %1902 = vmatpush.bf16.msra.mxu0 0
      %1903 = vmatpush.bf16.msra.mxu0 0
      %1904 = vmatpush.bf16.msra.mxu0 0
      %1905 = vmatpush.bf16.msra.mxu0 %v1896
      %1906 = vmatmul.bf16.gmra.mxu0 %v1573
      %v1907 = vpop.f32.mrf.mxu0
      %v1908 = vadd.f32 0.0, %v1907
      %v1909 = vpop.f32.mrf.mxu0
      %v1910 = vadd.f32 0.0, %v1909
      %1911 = vmatmul.bf16.gmra.mxu0 %v1893
      %v1912 = vpop.f32.mrf.mxu0
      %v1913 = vadd.f32 0.0, %v1912
      %v1914 = vpop.f32.mrf.mxu0
      %v1915 = vadd.f32 0.0, %v1914
      %1916 = vdwg.mxu0
      %v1917 = vadd.f32 %v1883, %v1908
      %v1918 = vadd.f32 %v1884, %v1910
      %v1919 = vadd.f32 %v1885, %v1913
      %v1920 = vadd.f32 %v1886, %v1915
      %v1921 = vrot.slane %v1847, 4
      %v1922 = vrot.slane %v1850, 5
      %v1923 = vor.u32 %v1921, %v1922
      %v1924 = vrot.slane %v1923, 4
      %v1926 = vshll.u32 %v1503, 16
      %v1928 = vrot.slane %v1926, 5
      %v1929 = vsel %vm1031, %v1924, %v1928
      %s1930 = scalar_lea.vmem %s6, 16
      %v1931 = vld [vmem:[%s1930] sm:$0x3]
      %v1932 = vunpack.c.l.b16 %v1929
      %v1933 = vpack.c.b16 %v1932, %v1806
      %v1935 = vsel %vm946, %v1933, 0
      %v1938 = vsel %vm956, %v1931, 0
      %1940 = vmatpush.bf16.msra.mxu0 0
      %1941 = vmatpush.bf16.msra.mxu0 0
      %1942 = vmatpush.bf16.msra.mxu0 0
      %1943 = vmatpush.bf16.msra.mxu0 0
      %1944 = vmatpush.bf16.msra.mxu0 0
      %1945 = vmatpush.bf16.msra.mxu0 0
      %1946 = vmatpush.bf16.msra.mxu0 0
      %1947 = vmatpush.bf16.msra.mxu0 %v1938
      %1948 = vmatmul.bf16.gmra.mxu0 %v1679
      %v1949 = vpop.f32.mrf.mxu0
      %v1950 = vadd.f32 0.0, %v1949
      %v1951 = vpop.f32.mrf.mxu0
      %v1952 = vadd.f32 0.0, %v1951
      %1953 = vmatmul.bf16.gmra.mxu0 %v1935
      %v1954 = vpop.f32.mrf.mxu0
      %v1955 = vadd.f32 0.0, %v1954
      %v1956 = vpop.f32.mrf.mxu0
      %v1957 = vadd.f32 0.0, %v1956
      %1958 = vdwg.mxu0
      %v1959 = vadd.f32 %v1917, %v1950
      %v1960 = vadd.f32 %v1918, %v1952
      %v1961 = vadd.f32 %v1919, %v1955
      %v1962 = vadd.f32 %v1920, %v1957
      %v1963 = vld [vmem:[%s7] sm:$0x1]
      %v1965 = vperm.slane %v1963, 0
      %v1967 = vadd.f32 %v1959, %v1965
      %v1968 = vadd.f32 %v1960, %v1965
      %v1969 = vadd.f32 %v1961, %v1965
      %v1970 = vadd.f32 %v1962, %v1965
      %v1971 = vld [vmem:[%s642] sm:$0xff]
      %v1972 = vld [vmem:[%s642 + $0x8] sm:$0xff]
      %v1973 = vld [vmem:[%s642 + $0x10] sm:$0xff]
      %v1974 = vld [vmem:[%s642 + $0x18] sm:$0xff]
      %v1975 = vpack.c.bf16 %v1972, %v1971
      %v1976 = vpack.c.bf16 %v1974, %v1973
      %v1977 = vpack.c.bf16 %v726, %v725
      %v1978 = vpack.c.bf16 %v728, %v727
      %v1979 = vld [vmem:[%s8] sm:$0x3]
      %v1980 = vld [vmem:[%s9] sm:$0x3]
      %v1982 = vsel %vm946, %v1977, 0
      %v1985 = vsel %vm946, %v1978, 0
      %v1988 = vsel %vm956, %v1980, 0
      %1990 = vmatpush.bf16.msra.mxu0 0
      %1991 = vmatpush.bf16.msra.mxu0 0
      %1992 = vmatpush.bf16.msra.mxu0 0
      %1993 = vmatpush.bf16.msra.mxu0 0
      %1994 = vmatpush.bf16.msra.mxu0 0
      %1995 = vmatpush.bf16.msra.mxu0 0
      %1996 = vmatpush.bf16.msra.mxu0 0
      %1997 = vmatpush.bf16.msra.mxu0 %v1988
      %1998 = vmatmul.bf16.gmra.mxu0 %v1982
      %v1999 = vpop.f32.mrf.mxu0
      %v2000 = vadd.f32 0.0, %v1999
      %v2001 = vpop.f32.mrf.mxu0
      %v2002 = vadd.f32 0.0, %v2001
      %2003 = vmatmul.bf16.gmra.mxu0 %v1985
      %v2004 = vpop.f32.mrf.mxu0
      %v2005 = vadd.f32 0.0, %v2004
      %v2006 = vpop.f32.mrf.mxu0
      %v2007 = vadd.f32 0.0, %v2006
      %2008 = vdwg.mxu0
      %v2010 = vsel %vm946, %v1975, 0
      %v2013 = vsel %vm946, %v1976, 0
      %v2016 = vsel %vm956, %v1979, 0
      %2018 = vmatpush.bf16.msra.mxu0 0
      %2019 = vmatpush.bf16.msra.mxu0 0
      %2020 = vmatpush.bf16.msra.mxu0 0
      %2021 = vmatpush.bf16.msra.mxu0 0
      %2022 = vmatpush.bf16.msra.mxu0 0
      %2023 = vmatpush.bf16.msra.mxu0 0
      %2024 = vmatpush.bf16.msra.mxu0 0
      %2025 = vmatpush.bf16.msra.mxu0 %v2016
      %2026 = vmatmul.bf16.gmra.mxu0 %v2010
      %v2027 = vpop.f32.mrf.mxu0
      %v2028 = vadd.f32 %v2000, %v2027
      %v2029 = vpop.f32.mrf.mxu0
      %v2030 = vadd.f32 %v2002, %v2029
      %2031 = vmatmul.bf16.gmra.mxu0 %v2013
      %v2032 = vpop.f32.mrf.mxu0
      %v2033 = vadd.f32 %v2005, %v2032
      %v2034 = vpop.f32.mrf.mxu0
      %v2035 = vadd.f32 %v2007, %v2034
      %2036 = vdwg.mxu0
      %v2037 = vld [vmem:[%s10] sm:$0x1]
      %v2039 = vperm.slane %v2037, 0
      %v2041 = vadd.f32 %v2028, %v2039
      %v2042 = vadd.f32 %v2030, %v2039
      %v2043 = vadd.f32 %v2033, %v2039
      %v2044 = vadd.f32 %v2035, %v2039
      %v2045 = vmax.f32 %v2041, 0.0
      %v2046 = vmax.f32 %v2042, 0.0
      %v2047 = vmax.f32 %v2043, 0.0
      %v2048 = vmax.f32 %v2044, 0.0
      %v2049 = vpack.c.bf16 %v2046, %v2045
      %v2050 = vpack.c.bf16 %v2048, %v2047
      %v2051 = vld [vmem:[%s11] sm:$0xf]
      %v2052 = vld [vmem:[%s12] sm:$0x1]
      %v2054 = vperm.slane %v2052, 0
      %vm2056 = vcmask 64512
      %v2058 = vsel %vm2056, %v2049, 0
      %v2061 = vsel %vm2056, %v2050, 0
      %vm2063 = vcmask 1043456
      %v2065 = vsel %vm2063, %v2051, 0
      %2067 = vmatpush.bf16.msra.mxu0 0
      %2068 = vmatpush.bf16.msra.mxu0 0
      %2069 = vmatpush.bf16.msra.mxu0 0
      %2070 = vmatpush.bf16.msra.mxu0 0
      %2071 = vmatpush.bf16.msra.mxu0 0
      %2072 = vmatpush.bf16.msra.mxu0 0
      %2073 = vmatpush.bf16.msra.mxu0 0
      %2074 = vmatpush.bf16.msra.mxu0 %v2065
      %2075 = vmatmul.bf16.gmra.mxu0 %v2058
      %v2076 = vpop.f32.mrf.mxu0
      %v2077 = vadd.f32 %v2054, %v2076
      %v2078 = vpop.f32.mrf.mxu0
      %v2079 = vadd.f32 %v2054, %v2078
      %2080 = vmatmul.bf16.gmra.mxu0 %v2061
      %v2081 = vpop.f32.mrf.mxu0
      %v2082 = vadd.f32 %v2054, %v2081
      %v2083 = vpop.f32.mrf.mxu0
      %v2084 = vadd.f32 %v2054, %v2083
      %2085 = vdwg.mxu0
      %2090 = vrot.lane.b32.xlu0 %v2077, 124
      %v2091 = vpop.permute.xlu0 %2090
      %2092 = vrot.lane.b32.xlu0 %v2079, 124
      %v2093 = vpop.permute.xlu0 %2092
      %2094 = vrot.lane.b32.xlu0 %v2082, 124
      %v2095 = vpop.permute.xlu0 %2094
      %2096 = vrot.lane.b32.xlu0 %v2084, 124
      %v2097 = vpop.permute.xlu0 %2096
      %v2102 = vadd.f32 %v1967, %v2091
      %v2103 = vadd.f32 %v1968, %v2093
      %v2104 = vadd.f32 %v1969, %v2095
      %v2105 = vadd.f32 %v1970, %v2097
      %2106 = vrot.lane.b32.xlu0 %v2077, 120
      %v2107 = vpop.permute.xlu0 %2106
      %2108 = vrot.lane.b32.xlu0 %v2079, 120
      %v2109 = vpop.permute.xlu0 %2108
      %2110 = vrot.lane.b32.xlu0 %v2082, 120
      %v2111 = vpop.permute.xlu0 %2110
      %2112 = vrot.lane.b32.xlu0 %v2084, 120
      %v2113 = vpop.permute.xlu0 %2112
      %v2118 = vadd.f32 %v2077, %v2107
      %v2119 = vadd.f32 %v2079, %v2109
      %v2120 = vadd.f32 %v2082, %v2111
      %v2121 = vadd.f32 %v2084, %v2113
      %v2122 = vsub.f32 %v1967, %v2091
      %v2123 = vsub.f32 %v1968, %v2093
      %v2124 = vsub.f32 %v1969, %v2095
      %v2125 = vsub.f32 %v1970, %v2097
      %v2126 = vsub.f32 %v2077, %v2107
      %v2127 = vsub.f32 %v2079, %v2109
      %v2128 = vsub.f32 %v2082, %v2111
      %v2129 = vsub.f32 %v2084, %v2113
      %v2130 = vadd.f32 %v2102, %v2118
      %v2131 = vadd.f32 %v2103, %v2119
      %v2132 = vadd.f32 %v2104, %v2120
      %v2133 = vadd.f32 %v2105, %v2121
      %v2134 = vsub.f32 %v2102, %v2118
      %v2135 = vsub.f32 %v2103, %v2119
      %v2136 = vsub.f32 %v2104, %v2120
      %v2137 = vsub.f32 %v2105, %v2121
      %2142 = vrot.lane.b32.xlu0 %v2134, 4
      %v2143 = vpop.permute.xlu0 %2142
      %2144 = vrot.lane.b32.xlu0 %v2135, 4
      %v2145 = vpop.permute.xlu0 %2144
      %2146 = vrot.lane.b32.xlu0 %v2136, 4
      %v2147 = vpop.permute.xlu0 %2146
      %2148 = vrot.lane.b32.xlu0 %v2137, 4
      %v2149 = vpop.permute.xlu0 %2148
      %v2154 = vsel %vm946, %v2130, %v2143
      %v2155 = vsel %vm946, %v2131, %v2145
      %v2156 = vsel %vm946, %v2132, %v2147
      %v2157 = vsel %vm946, %v2133, %v2149
      %2158 = vst.msk [vmem:[%s653] sm:$0xff] %vm2056, %v2154
      %2159 = vst.msk [vmem:[%s653 + $0x10] sm:$0xff] %vm2056, %v2155
      %2160 = vst.msk [vmem:[%s653 + $0x20] sm:$0xff] %vm2056, %v2156
      %2161 = vst.msk [vmem:[%s653 + $0x30] sm:$0xff] %vm2056, %v2157
      %v2162 = vadd.f32 %v2122, %v2126
      %v2163 = vadd.f32 %v2123, %v2127
      %v2164 = vadd.f32 %v2124, %v2128
      %v2165 = vadd.f32 %v2125, %v2129
      %v2166 = vsub.f32 %v2122, %v2126
      %v2167 = vsub.f32 %v2123, %v2127
      %v2168 = vsub.f32 %v2124, %v2128
      %v2169 = vsub.f32 %v2125, %v2129
      %2174 = vrot.lane.b32.xlu0 %v2166, 4
      %v2175 = vpop.permute.xlu0 %2174
      %2176 = vrot.lane.b32.xlu0 %v2167, 4
      %v2177 = vpop.permute.xlu0 %2176
      %2178 = vrot.lane.b32.xlu0 %v2168, 4
      %v2179 = vpop.permute.xlu0 %2178
      %2180 = vrot.lane.b32.xlu0 %v2169, 4
      %v2181 = vpop.permute.xlu0 %2180
      %v2186 = vsel %vm946, %v2162, %v2175
      %v2187 = vsel %vm946, %v2163, %v2177
      %v2188 = vsel %vm946, %v2164, %v2179
      %v2189 = vsel %vm946, %v2165, %v2181
      %s2190 = scalar_lea.vmem %s653, 8
      %2191 = vst.msk [vmem:[%s2190] sm:$0xff] %vm2056, %v2186
      %2192 = vst.msk [vmem:[%s2190 + $0x10] sm:$0xff] %vm2056, %v2187
      %2193 = vst.msk [vmem:[%s2190 + $0x20] sm:$0xff] %vm2056, %v2188
      %2194 = vst.msk [vmem:[%s2190 + $0x30] sm:$0xff] %vm2056, %v2189
      %s2195 = smul.u32 4, %s29
      %p2196 = scmp.lt.s32.totalorder %s28, 1
      %s2197 = scalar_select %p2196, %s28, 1
      %p2198 = scmp.lt.s32.totalorder %s2195, 7
      %s2199 = scalar_select %p2198, %s2195, 7
      %s2200 = smul.addr %s2199, 2
      %s2201 = smul.addr %s2197, 16
      %s2202 = sadd.s32 %s2200, %s2201
      %s2203 = smul.addr %s2202, 8
      %s2204 = scalar_lea.vmem %s13, %s2203
      // Predicated region
      $region81: #{wfu_forward.1} parent=71 // pred_check
        %p2205 = pneg %p373
      $region82: #{wfu_forward.1} parent=71 // pred_check_branch
        %2207 = sbr.rel (%p2205) target = $region84
      $region83: #{wfu_forward.1} parent=71 // pred_region
        %s2208 = smul.u32 4, %s29
      $region84: #{wfu_forward.1} parent=71 // pred_fallthru
        _
    $region72: #{wfu_forward.1} parent=5 // pred_fallthru
      _
    %p2209 = scmp.le.s32.totalorder 2, %s19
    // Predicated region
    $region85: #{wfu_forward.1} parent=5 // pred_check
      %p2210 = pneg %p2209
    $region86: #{wfu_forward.1} parent=5 // pred_check_branch
      %2212 = sbr.rel (%p2210) target = $region88
    $region87: #{wfu_forward.1} parent=5 // pred_region
      %s2213 = ssub.s32 %s19, 2
      // Predicated region
      $region89: #{wfu_forward.1} parent=87 // pred_check
        %p2214 = pneg %p379
      $region90: #{wfu_forward.1} parent=87 // pred_check_branch
        %2216 = sbr.rel (%p2214) target = $region92
      $region91: #{wfu_forward.1} parent=87 // pred_region
        %s2217 = smul.u32 4, %s31
        %p2218 = scmp.lt.s32.totalorder %s30, 1
        %s2219 = scalar_select %p2218, %s30, 1
        %p2220 = scmp.lt.s32.totalorder %s2217, 7
        %s2221 = scalar_select %p2220, %s2217, 7
        %s2222 = smul.addr %s2221, 2
        %s2223 = smul.addr %s2219, 16
        %s2224 = sadd.s32 %s2222, %s2223
        %s2225 = smul.addr %s2224, 8
        %s2226 = scalar_lea.vmem %s13, %s2225
      $region92: #{wfu_forward.1} parent=87 // pred_fallthru
        _
    $region88: #{wfu_forward.1} parent=5 // pred_fallthru
      _
  $region6: #{wfu_forward.1} parent=0 // loop_footer
    %s23 = sadd.s32 1, %s19
  $region7: #{wfu_forward.1} parent=0 // loop_footer_branch
    %18 = sbr.rel target = $region3
  $region8: #{wfu_forward.1} parent=0 // loop_exit
    _

</llo_original>
